<compile_context>
chip_gen: v6e
topology: v6e:2x2x1
jax: 0.10.0
libtpu: 0.0.40
codegen_flags: <defaults>
</compile_context>

<pallas_src>
import math
import jax
import jax.numpy as jnp
from jax import lax
from jax.experimental import pallas as pl
from jax.experimental.pallas import tpu as pltpu

# ----------------------------- configuration -----------------------------
B = 2            # batch
S = 8            # sequence length
D = 32           # input_dim (d_model)
H = 4            # num_heads
DH = D // H      # per-head dim
DFF = 64         # feature_dim (d_ff)
EPS = 1e-5       # nn.LayerNorm default eps
T = B * S        # flattened token count
SCALE = 1.0 / math.sqrt(DH)


# ------------------------------ Pallas kernel -----------------------------
def transformer_layer_kernel(
    x_ref,        # (T, D)      tokens, batch flattened
    wqkvt_ref,    # (3D, D)     fused, transposed QKV weights (1/sqrt(DH) folded into Q)
    bqkv_ref,     # (3D, 1)     fused QKV bias (scale folded into Q rows)
    wo_ref,       # (D, D)      output-projection weight (in, out)
    w1_ref,       # (D, DFF)
    w2_ref,       # (DFF, D)
    vec_ref,      # (8, DFF)    packed small vectors (rows: b1,bo,g1,be1,b2,g2,be2,0)
    mask_ref,     # (T, T)      additive cross-batch mask (0 within batch, -1e30 across)
    o_ref,        # (T, D)
):
    x = x_ref[...]                                              # (T, D) f32

    # ---- fused QKV projection: (3D,D) . (T,D)^T -> (3D,T), bias as lane broadcast ----
    qkvT = lax.dot_general(
        wqkvt_ref[...], x,
        dimension_numbers=(((1,), (1,)), ((), ())),
        preferred_element_type=jnp.float32,
    ) + bqkv_ref[...]                                           # (3D, T)

    neg_mask = mask_ref[...]                                    # (T, T) constant

    # ---- per-head attention; head slices are sublane-aligned (multiples of 8) ----
    pv_heads = []
    for h in range(H):                                          # static unroll (H = 4)
        qh = qkvT[h * DH:(h + 1) * DH, :]                       # (DH, T)  scale folded
        kh = qkvT[D + h * DH:D + (h + 1) * DH, :]               # (DH, T)
        vh = qkvT[2 * D + h * DH:2 * D + (h + 1) * DH, :]       # (DH, T)

        # scores = q^T k : contract the DH axis of both operands (no .T materialized)
        s = lax.dot_general(qh, kh,
                            dimension_numbers=(((0,), (0,)), ((), ())),
                            preferred_element_type=jnp.float32) + neg_mask   # (T, T)
        s = s - jnp.max(s, axis=-1, keepdims=True)
        p = jnp.exp(s)
        p = p * pl.reciprocal(jnp.sum(p, axis=-1, keepdims=True), approx=True)

        # pv = p v^T : contract p's key axis with vh's token axis -> (T, DH)
        pv = lax.dot_general(p, vh,
                             dimension_numbers=(((1,), (1,)), ((), ())),
                             preferred_element_type=jnp.float32)
        pv_heads.append(pv)

    # ---- fused output projection: one (T,D)@(D,D) matmul over all heads ----
    pv_all = jnp.concatenate(pv_heads, axis=1)                  # (T, D), head-major cols
    attn = jnp.dot(pv_all, wo_ref[...], preferred_element_type=jnp.float32)
    attn = attn + vec_ref[1:2, :D]                              # output-projection bias

    # ---- residual + LayerNorm1 (dropout == identity in eval mode) ----
    h1 = x + attn
    mu = jnp.mean(h1, axis=-1, keepdims=True)
    var = jnp.mean((h1 - mu) ** 2, axis=-1, keepdims=True)
    h1 = (h1 - mu) * lax.rsqrt(var + EPS) * vec_ref[2:3, :D] + vec_ref[3:4, :D]

    # ---- position-wise feed-forward ----
    f = jnp.dot(h1, w1_ref[...], preferred_element_type=jnp.float32) + vec_ref[0:1, :]
    f = jnp.maximum(f, 0.0)                                     # ReLU (dropout == id)
    f = jnp.dot(f, w2_ref[...], preferred_element_type=jnp.float32) + vec_ref[4:5, :D]

    # ---- residual + LayerNorm2 ----
    h2 = h1 + f
    mu2 = jnp.mean(h2, axis=-1, keepdims=True)
    var2 = jnp.mean((h2 - mu2) ** 2, axis=-1, keepdims=True)
    h2 = (h2 - mu2) * lax.rsqrt(var2 + EPS) * vec_ref[5:6, :D] + vec_ref[6:7, :D]

    # NOTE: D=32 (<128 lanes) -> lane-masked store; a relayout to a lane-dense slab
    # would cost more than the masked vst saves at this size (review agrees).
    o_ref[...] = h2


# ------------------- one-time, x-independent parameter packing -------------------
def prepare_params(p):
    """Pack/scale/transpose all parameters once; reused by every forward call."""
    wqkv = jnp.concatenate([p["wq"] * SCALE, p["wk"], p["wv"]], axis=1)    # (D, 3D)
    bqkv = jnp.concatenate([p["bq"] * SCALE, p["bk"], p["bv"]], axis=1)    # (1, 3D)
    wqkvt = wqkv.T                                                         # (3D, D)
    bqkvt = bqkv.T                                                         # (3D, 1)

    def row(v):  # pad a (1, n) vector to (1, DFF)
        return jnp.pad(v, ((0, 0), (0, DFF - v.shape[1])))
    vec = jnp.concatenate(
        [row(p["b1"]), row(p["bo"]), row(p["g1"]), row(p["be1"]),
         row(p["b2"]), row(p["g2"]), row(p["be2"]),
         jnp.zeros((1, DFF), jnp.float32)], axis=0)                        # (8, DFF)

    # Flattened tokens may only attend within their own batch (compile-time constant).
    rb = jnp.arange(T, dtype=jnp.int32)[:, None] // S
    cb = jnp.arange(T, dtype=jnp.int32)[None, :] // S
    neg_mask = jnp.where(rb == cb, 0.0, -1e30).astype(jnp.float32)         # (T, T)

    packed = {"wqkvt": wqkvt, "bqkvt": bqkvt, "wo": p["wo"],
              "w1": p["w1"], "w2": p["w2"], "vec": vec, "mask": neg_mask}
    return jax.tree_util.tree_map(jnp.asarray, packed)


# ------------------------------- forward ----------------------------------
@jax.jit
def base_transformer_layer(x, pk):
    """x: (B, S, D) float32; pk: packed params from prepare_params()."""
    x2 = x.reshape(T, D)
    vmem = pl.BlockSpec(memory_space=pltpu.MemorySpace.VMEM)
    cost = pl.CostEstimate(flops=300_000, transcendentals=1_200, bytes_accessed=40_000)
    out = pl.pallas_call(
        transformer_layer_kernel,
        out_shape=jax.ShapeDtypeStruct((T, D), jnp.float32),
        in_specs=[vmem] * 8,
        out_specs=vmem,
        cost_estimate=cost,
    )(x2, pk["wqkvt"], pk["bqkvt"], pk["wo"], pk["w1"], pk["w2"],
      pk["vec"], pk["mask"])
    return out.reshape(B, S, D)


# --------------------------- parameter init -------------------------------
def init_params(key):
    """Deterministic synthetic parameters. Linear weights stored as (in, out)."""
    names_shapes = [
        ("wq", (D, D)), ("bq", (1, D)), ("wk", (D, D)), ("bk", (1, D)),
        ("wv", (D, D)), ("bv", (1, D)), ("wo", (D, D)), ("bo", (1, D)),
        ("w1", (D, DFF)), ("b1", (1, DFF)),
        ("w2", (DFF, D)), ("b2", (1, D)),
    ]
    params = {}
    keys = jax.random.split(key, len(names_shapes))
    for (name, shape), k in zip(names_shapes, keys):
        fan_in = shape[0] if name.startswith("w") else shape[1]
        params[name] = (jax.random.normal(k, shape, jnp.float32)
                        / math.sqrt(fan_in)).astype(jnp.float32)
    # LayerNorm affine params: ones / zeros (PyTorch default init)
    params["g1"] = jnp.ones((1, D), jnp.float32)
    params["be1"] = jnp.zeros((1, D), jnp.float32)
    params["g2"] = jnp.ones((1, D), jnp.float32)
    params["be2"] = jnp.zeros((1, D), jnp.float32)
    return params


# ------------------------- pure-JAX reference ------------------------------
def reference(x, p):
    q = x @ p["wq"] + p["bq"]
    k = x @ p["wk"] + p["bk"]
    v = x @ p["wv"] + p["bv"]
    qh = q.reshape(B, S, H, DH).transpose(0, 2, 1, 3)
    kh = k.reshape(B, S, H, DH).transpose(0, 2, 1, 3)
    vh = v.reshape(B, S, H, DH).transpose(0, 2, 1, 3)
    s = jnp.einsum("bhqd,bhkd->bhqk", qh, kh) / math.sqrt(DH)
    pattn = jax.nn.softmax(s, axis=-1)
    o = jnp.einsum("bhqk,bhkd->bhqd", pattn, vh).transpose(0, 2, 1, 3).reshape(B, S, D)
    attn = o @ p["wo"] + p["bo"]

    def ln(h, g, b):
        mu = h.mean(-1, keepdims=True)
        var = ((h - mu) ** 2).mean(-1, keepdims=True)
        return (h - mu) / jnp.sqrt(var + EPS) * g + b

    h1 = ln(x + attn, p["g1"], p["be1"])
    f = jnp.maximum(h1 @ p["w1"] + p["b1"], 0.0) @ p["w2"] + p["b2"]
    return ln(h1 + f, p["g2"], p["be2"])


# --------------------------------- main ------------------------------------
if __name__ == "__main__":
    root = jax.random.PRNGKey(0)
    kx, kp = jax.random.split(root)
    x = jax.random.normal(kx, (B, S, D), jnp.float32)
    params = init_params(kp)

    packed = prepare_params(params)          # one-time, x-independent packing
    out = base_transformer_layer(x, packed)
    out = jax.block_until_ready(out)

    ref = reference(x, params)
    assert out.shape == (B, S, D)
    # Tolerance accounts for pl.reciprocal(approx=True) in the softmax (~bf16-grade).
    assert jnp.allclose(out, ref, atol=5e-3, rtol=5e-3), \
        f"max abs err {jnp.max(jnp.abs(out - ref))}"
    print("KERNEL_OK")
</pallas_src>

<mosaic_0001>
module attributes {stable_mosaic.version = 11 : i64} {
  func.func @transformer_layer_kernel(%arg0: memref<16x32xf32, #tpu.memory_space<vmem>>, %arg1: memref<96x32xf32, #tpu.memory_space<vmem>>, %arg2: memref<96x1xf32, #tpu.memory_space<vmem>>, %arg3: memref<32x32xf32, #tpu.memory_space<vmem>>, %arg4: memref<32x64xf32, #tpu.memory_space<vmem>>, %arg5: memref<64x32xf32, #tpu.memory_space<vmem>>, %arg6: memref<8x64xf32, #tpu.memory_space<vmem>>, %arg7: memref<16x16xf32, #tpu.memory_space<vmem>>, %arg8: memref<16x32xf32, #tpu.memory_space<vmem>>) attributes {dimension_semantics = [], scalar_prefetch = 0 : i64, scratch_operands = 0 : i64, tpu.core_type = #tpu.core_type<tc>} {
    %c0 = arith.constant 0 : index
    %c0_0 = arith.constant 0 : index
    %0 = vector.load %arg0[%c0, %c0_0] : memref<16x32xf32, #tpu.memory_space<vmem>>, vector<16x32xf32>
    %c0_1 = arith.constant 0 : index
    %c0_2 = arith.constant 0 : index
    %1 = vector.load %arg1[%c0_1, %c0_2] : memref<96x32xf32, #tpu.memory_space<vmem>>, vector<96x32xf32>
    %cst = arith.constant dense<0.000000e+00> : vector<96x16xf32>
    %2 = tpu.matmul %1, %0, %cst {dimension_numbers = #tpu.dot_dimension_numbers<[1], [1], [0], [0], [0, 0, 1, 0], [], []>} : vector<96x32xf32>, vector<16x32xf32>, vector<96x16xf32> -> vector<96x16xf32>
    %c0_3 = arith.constant 0 : index
    %c0_4 = arith.constant 0 : index
    %3 = vector.load %arg2[%c0_3, %c0_4] : memref<96x1xf32, #tpu.memory_space<vmem>>, vector<96x1xf32>
    %4 = vector.broadcast %3 : vector<96x1xf32> to vector<96x16xf32>
    %5 = arith.addf %2, %4 : vector<96x16xf32>
    %c0_5 = arith.constant 0 : index
    %c0_6 = arith.constant 0 : index
    %6 = vector.load %arg7[%c0_5, %c0_6] : memref<16x16xf32, #tpu.memory_space<vmem>>, vector<16x16xf32>
    %7 = vector.extract_strided_slice %5 {offsets = [0, 0], sizes = [8, 16], strides = [1, 1]} : vector<96x16xf32> to vector<8x16xf32>
    %8 = vector.extract_strided_slice %5 {offsets = [32, 0], sizes = [8, 16], strides = [1, 1]} : vector<96x16xf32> to vector<8x16xf32>
    %9 = vector.extract_strided_slice %5 {offsets = [64, 0], sizes = [8, 16], strides = [1, 1]} : vector<96x16xf32> to vector<8x16xf32>
    %cst_7 = arith.constant dense<0.000000e+00> : vector<16x16xf32>
    %10 = tpu.matmul %7, %8, %cst_7 {dimension_numbers = #tpu.dot_dimension_numbers<[0], [0], [1], [1], [0, 1, 1, 1], [], []>} : vector<8x16xf32>, vector<8x16xf32>, vector<16x16xf32> -> vector<16x16xf32>
    %11 = arith.addf %10, %6 : vector<16x16xf32>
    %cst_8 = arith.constant dense<0xFF800000> : vector<16xf32>
    %12 = vector.multi_reduction <maximumf>, %11, %cst_8 [1] : vector<16x16xf32> to vector<16xf32>
    %13 = vector.shape_cast %12 : vector<16xf32> to vector<16x1xf32>
    %14 = vector.broadcast %13 : vector<16x1xf32> to vector<16x16xf32>
    %15 = arith.subf %11, %14 : vector<16x16xf32>
    %16 = math.exp %15 : vector<16x16xf32>
    %cst_9 = arith.constant dense<0.000000e+00> : vector<16xf32>
    %17 = vector.multi_reduction <add>, %16, %cst_9 [1] : vector<16x16xf32> to vector<16xf32>
    %18 = vector.shape_cast %17 : vector<16xf32> to vector<16x1xf32>
    %19 = tpu.reciprocal %18 {approx = true} : vector<16x1xf32> -> vector<16x1xf32>
    %20 = vector.broadcast %19 : vector<16x1xf32> to vector<16x16xf32>
    %21 = arith.mulf %16, %20 : vector<16x16xf32>
    %cst_10 = arith.constant dense<0.000000e+00> : vector<16x8xf32>
    %22 = tpu.matmul %21, %9, %cst_10 {dimension_numbers = #tpu.dot_dimension_numbers<[1], [1], [0], [0], [0, 0, 1, 0], [], []>} : vector<16x16xf32>, vector<8x16xf32>, vector<16x8xf32> -> vector<16x8xf32>
    %23 = vector.extract_strided_slice %5 {offsets = [8, 0], sizes = [8, 16], strides = [1, 1]} : vector<96x16xf32> to vector<8x16xf32>
    %24 = vector.extract_strided_slice %5 {offsets = [40, 0], sizes = [8, 16], strides = [1, 1]} : vector<96x16xf32> to vector<8x16xf32>
    %25 = vector.extract_strided_slice %5 {offsets = [72, 0], sizes = [8, 16], strides = [1, 1]} : vector<96x16xf32> to vector<8x16xf32>
    %cst_11 = arith.constant dense<0.000000e+00> : vector<16x16xf32>
    %26 = tpu.matmul %23, %24, %cst_11 {dimension_numbers = #tpu.dot_dimension_numbers<[0], [0], [1], [1], [0, 1, 1, 1], [], []>} : vector<8x16xf32>, vector<8x16xf32>, vector<16x16xf32> -> vector<16x16xf32>
    %27 = arith.addf %26, %6 : vector<16x16xf32>
    %cst_12 = arith.constant dense<0xFF800000> : vector<16xf32>
    %28 = vector.multi_reduction <maximumf>, %27, %cst_12 [1] : vector<16x16xf32> to vector<16xf32>
    %29 = vector.shape_cast %28 : vector<16xf32> to vector<16x1xf32>
    %30 = vector.broadcast %29 : vector<16x1xf32> to vector<16x16xf32>
    %31 = arith.subf %27, %30 : vector<16x16xf32>
    %32 = math.exp %31 : vector<16x16xf32>
    %cst_13 = arith.constant dense<0.000000e+00> : vector<16xf32>
    %33 = vector.multi_reduction <add>, %32, %cst_13 [1] : vector<16x16xf32> to vector<16xf32>
    %34 = vector.shape_cast %33 : vector<16xf32> to vector<16x1xf32>
    %35 = tpu.reciprocal %34 {approx = true} : vector<16x1xf32> -> vector<16x1xf32>
    %36 = vector.broadcast %35 : vector<16x1xf32> to vector<16x16xf32>
    %37 = arith.mulf %32, %36 : vector<16x16xf32>
    %cst_14 = arith.constant dense<0.000000e+00> : vector<16x8xf32>
    %38 = tpu.matmul %37, %25, %cst_14 {dimension_numbers = #tpu.dot_dimension_numbers<[1], [1], [0], [0], [0, 0, 1, 0], [], []>} : vector<16x16xf32>, vector<8x16xf32>, vector<16x8xf32> -> vector<16x8xf32>
    %39 = vector.extract_strided_slice %5 {offsets = [16, 0], sizes = [8, 16], strides = [1, 1]} : vector<96x16xf32> to vector<8x16xf32>
    %40 = vector.extract_strided_slice %5 {offsets = [48, 0], sizes = [8, 16], strides = [1, 1]} : vector<96x16xf32> to vector<8x16xf32>
    %41 = vector.extract_strided_slice %5 {offsets = [80, 0], sizes = [8, 16], strides = [1, 1]} : vector<96x16xf32> to vector<8x16xf32>
    %cst_15 = arith.constant dense<0.000000e+00> : vector<16x16xf32>
    %42 = tpu.matmul %39, %40, %cst_15 {dimension_numbers = #tpu.dot_dimension_numbers<[0], [0], [1], [1], [0, 1, 1, 1], [], []>} : vector<8x16xf32>, vector<8x16xf32>, vector<16x16xf32> -> vector<16x16xf32>
    %43 = arith.addf %42, %6 : vector<16x16xf32>
    %cst_16 = arith.constant dense<0xFF800000> : vector<16xf32>
    %44 = vector.multi_reduction <maximumf>, %43, %cst_16 [1] : vector<16x16xf32> to vector<16xf32>
    %45 = vector.shape_cast %44 : vector<16xf32> to vector<16x1xf32>
    %46 = vector.broadcast %45 : vector<16x1xf32> to vector<16x16xf32>
    %47 = arith.subf %43, %46 : vector<16x16xf32>
    %48 = math.exp %47 : vector<16x16xf32>
    %cst_17 = arith.constant dense<0.000000e+00> : vector<16xf32>
    %49 = vector.multi_reduction <add>, %48, %cst_17 [1] : vector<16x16xf32> to vector<16xf32>
    %50 = vector.shape_cast %49 : vector<16xf32> to vector<16x1xf32>
    %51 = tpu.reciprocal %50 {approx = true} : vector<16x1xf32> -> vector<16x1xf32>
    %52 = vector.broadcast %51 : vector<16x1xf32> to vector<16x16xf32>
    %53 = arith.mulf %48, %52 : vector<16x16xf32>
    %cst_18 = arith.constant dense<0.000000e+00> : vector<16x8xf32>
    %54 = tpu.matmul %53, %41, %cst_18 {dimension_numbers = #tpu.dot_dimension_numbers<[1], [1], [0], [0], [0, 0, 1, 0], [], []>} : vector<16x16xf32>, vector<8x16xf32>, vector<16x8xf32> -> vector<16x8xf32>
    %55 = vector.extract_strided_slice %5 {offsets = [24, 0], sizes = [8, 16], strides = [1, 1]} : vector<96x16xf32> to vector<8x16xf32>
    %56 = vector.extract_strided_slice %5 {offsets = [56, 0], sizes = [8, 16], strides = [1, 1]} : vector<96x16xf32> to vector<8x16xf32>
    %57 = vector.extract_strided_slice %5 {offsets = [88, 0], sizes = [8, 16], strides = [1, 1]} : vector<96x16xf32> to vector<8x16xf32>
    %cst_19 = arith.constant dense<0.000000e+00> : vector<16x16xf32>
    %58 = tpu.matmul %55, %56, %cst_19 {dimension_numbers = #tpu.dot_dimension_numbers<[0], [0], [1], [1], [0, 1, 1, 1], [], []>} : vector<8x16xf32>, vector<8x16xf32>, vector<16x16xf32> -> vector<16x16xf32>
    %59 = arith.addf %58, %6 : vector<16x16xf32>
    %cst_20 = arith.constant dense<0xFF800000> : vector<16xf32>
    %60 = vector.multi_reduction <maximumf>, %59, %cst_20 [1] : vector<16x16xf32> to vector<16xf32>
    %61 = vector.shape_cast %60 : vector<16xf32> to vector<16x1xf32>
    %62 = vector.broadcast %61 : vector<16x1xf32> to vector<16x16xf32>
    %63 = arith.subf %59, %62 : vector<16x16xf32>
    %64 = math.exp %63 : vector<16x16xf32>
    %cst_21 = arith.constant dense<0.000000e+00> : vector<16xf32>
    %65 = vector.multi_reduction <add>, %64, %cst_21 [1] : vector<16x16xf32> to vector<16xf32>
    %66 = vector.shape_cast %65 : vector<16xf32> to vector<16x1xf32>
    %67 = tpu.reciprocal %66 {approx = true} : vector<16x1xf32> -> vector<16x1xf32>
    %68 = vector.broadcast %67 : vector<16x1xf32> to vector<16x16xf32>
    %69 = arith.mulf %64, %68 : vector<16x16xf32>
    %cst_22 = arith.constant dense<0.000000e+00> : vector<16x8xf32>
    %70 = tpu.matmul %69, %57, %cst_22 {dimension_numbers = #tpu.dot_dimension_numbers<[1], [1], [0], [0], [0, 0, 1, 0], [], []>} : vector<16x16xf32>, vector<8x16xf32>, vector<16x8xf32> -> vector<16x8xf32>
    %71 = tpu.concatenate %22, %38, %54, %70 in 1 : vector<16x8xf32>, vector<16x8xf32>, vector<16x8xf32>, vector<16x8xf32> -> vector<16x32xf32>
    %c0_23 = arith.constant 0 : index
    %c0_24 = arith.constant 0 : index
    %72 = vector.load %arg3[%c0_23, %c0_24] : memref<32x32xf32, #tpu.memory_space<vmem>>, vector<32x32xf32>
    %cst_25 = arith.constant dense<0.000000e+00> : vector<16x32xf32>
    %73 = tpu.matmul %71, %72, %cst_25 {dimension_numbers = #tpu.dot_dimension_numbers<[1], [0], [0], [1], [0, 0, 1, 1], [], []>} : vector<16x32xf32>, vector<32x32xf32>, vector<16x32xf32> -> vector<16x32xf32>
    %c1 = arith.constant 1 : index
    %c0_26 = arith.constant 0 : index
    %74 = vector.load %arg6[%c1, %c0_26] : memref<8x64xf32, #tpu.memory_space<vmem>>, vector<1x32xf32>
    %75 = vector.broadcast %74 : vector<1x32xf32> to vector<16x32xf32>
    %76 = arith.addf %73, %75 : vector<16x32xf32>
    %77 = arith.addf %0, %76 : vector<16x32xf32>
    %cst_27 = arith.constant dense<0.000000e+00> : vector<16xf32>
    %78 = vector.multi_reduction <add>, %77, %cst_27 [1] : vector<16x32xf32> to vector<16xf32>
    %79 = vector.shape_cast %78 : vector<16xf32> to vector<16x1xf32>
    %cst_28 = arith.constant 3.200000e+01 : f32
    %80 = vector.broadcast %cst_28 : f32 to vector<16x1xf32>
    %81 = arith.divf %79, %80 : vector<16x1xf32>
    %82 = vector.broadcast %81 : vector<16x1xf32> to vector<16x32xf32>
    %83 = arith.subf %77, %82 : vector<16x32xf32>
    %84 = arith.mulf %83, %83 : vector<16x32xf32>
    %cst_29 = arith.constant dense<0.000000e+00> : vector<16xf32>
    %85 = vector.multi_reduction <add>, %84, %cst_29 [1] : vector<16x32xf32> to vector<16xf32>
    %86 = vector.shape_cast %85 : vector<16xf32> to vector<16x1xf32>
    %cst_30 = arith.constant 3.200000e+01 : f32
    %87 = vector.broadcast %cst_30 : f32 to vector<16x1xf32>
    %88 = arith.divf %86, %87 : vector<16x1xf32>
    %89 = vector.broadcast %81 : vector<16x1xf32> to vector<16x32xf32>
    %90 = arith.subf %77, %89 : vector<16x32xf32>
    %cst_31 = arith.constant 9.99999974E-6 : f32
    %91 = vector.broadcast %cst_31 : f32 to vector<16x1xf32>
    %92 = arith.addf %88, %91 : vector<16x1xf32>
    %93 = math.rsqrt %92 : vector<16x1xf32>
    %94 = vector.broadcast %93 : vector<16x1xf32> to vector<16x32xf32>
    %95 = arith.mulf %90, %94 : vector<16x32xf32>
    %c2 = arith.constant 2 : index
    %c0_32 = arith.constant 0 : index
    %96 = vector.load %arg6[%c2, %c0_32] : memref<8x64xf32, #tpu.memory_space<vmem>>, vector<1x32xf32>
    %97 = vector.broadcast %96 : vector<1x32xf32> to vector<16x32xf32>
    %98 = arith.mulf %95, %97 : vector<16x32xf32>
    %c3 = arith.constant 3 : index
    %c0_33 = arith.constant 0 : index
    %99 = vector.load %arg6[%c3, %c0_33] : memref<8x64xf32, #tpu.memory_space<vmem>>, vector<1x32xf32>
    %100 = vector.broadcast %99 : vector<1x32xf32> to vector<16x32xf32>
    %101 = arith.addf %98, %100 : vector<16x32xf32>
    %c0_34 = arith.constant 0 : index
    %c0_35 = arith.constant 0 : index
    %102 = vector.load %arg4[%c0_34, %c0_35] : memref<32x64xf32, #tpu.memory_space<vmem>>, vector<32x64xf32>
    %cst_36 = arith.constant dense<0.000000e+00> : vector<16x64xf32>
    %103 = tpu.matmul %101, %102, %cst_36 {dimension_numbers = #tpu.dot_dimension_numbers<[1], [0], [0], [1], [0, 0, 1, 1], [], []>} : vector<16x32xf32>, vector<32x64xf32>, vector<16x64xf32> -> vector<16x64xf32>
    %c0_37 = arith.constant 0 : index
    %c0_38 = arith.constant 0 : index
    %104 = vector.load %arg6[%c0_37, %c0_38] : memref<8x64xf32, #tpu.memory_space<vmem>>, vector<1x64xf32>
    %105 = vector.broadcast %104 : vector<1x64xf32> to vector<16x64xf32>
    %106 = arith.addf %103, %105 : vector<16x64xf32>
    %cst_39 = arith.constant 0.000000e+00 : f32
    %107 = vector.broadcast %cst_39 : f32 to vector<16x64xf32>
    %108 = arith.maximumf %106, %107 : vector<16x64xf32>
    %c0_40 = arith.constant 0 : index
    %c0_41 = arith.constant 0 : index
    %109 = vector.load %arg5[%c0_40, %c0_41] : memref<64x32xf32, #tpu.memory_space<vmem>>, vector<64x32xf32>
    %cst_42 = arith.constant dense<0.000000e+00> : vector<16x32xf32>
    %110 = tpu.matmul %108, %109, %cst_42 {dimension_numbers = #tpu.dot_dimension_numbers<[1], [0], [0], [1], [0, 0, 1, 1], [], []>} : vector<16x64xf32>, vector<64x32xf32>, vector<16x32xf32> -> vector<16x32xf32>
    %c4 = arith.constant 4 : index
    %c0_43 = arith.constant 0 : index
    %111 = vector.load %arg6[%c4, %c0_43] : memref<8x64xf32, #tpu.memory_space<vmem>>, vector<1x32xf32>
    %112 = vector.broadcast %111 : vector<1x32xf32> to vector<16x32xf32>
    %113 = arith.addf %110, %112 : vector<16x32xf32>
    %114 = arith.addf %101, %113 : vector<16x32xf32>
    %cst_44 = arith.constant dense<0.000000e+00> : vector<16xf32>
    %115 = vector.multi_reduction <add>, %114, %cst_44 [1] : vector<16x32xf32> to vector<16xf32>
    %116 = vector.shape_cast %115 : vector<16xf32> to vector<16x1xf32>
    %cst_45 = arith.constant 3.200000e+01 : f32
    %117 = vector.broadcast %cst_45 : f32 to vector<16x1xf32>
    %118 = arith.divf %116, %117 : vector<16x1xf32>
    %119 = vector.broadcast %118 : vector<16x1xf32> to vector<16x32xf32>
    %120 = arith.subf %114, %119 : vector<16x32xf32>
    %121 = arith.mulf %120, %120 : vector<16x32xf32>
    %cst_46 = arith.constant dense<0.000000e+00> : vector<16xf32>
    %122 = vector.multi_reduction <add>, %121, %cst_46 [1] : vector<16x32xf32> to vector<16xf32>
    %123 = vector.shape_cast %122 : vector<16xf32> to vector<16x1xf32>
    %cst_47 = arith.constant 3.200000e+01 : f32
    %124 = vector.broadcast %cst_47 : f32 to vector<16x1xf32>
    %125 = arith.divf %123, %124 : vector<16x1xf32>
    %126 = vector.broadcast %118 : vector<16x1xf32> to vector<16x32xf32>
    %127 = arith.subf %114, %126 : vector<16x32xf32>
    %cst_48 = arith.constant 9.99999974E-6 : f32
    %128 = vector.broadcast %cst_48 : f32 to vector<16x1xf32>
    %129 = arith.addf %125, %128 : vector<16x1xf32>
    %130 = math.rsqrt %129 : vector<16x1xf32>
    %131 = vector.broadcast %130 : vector<16x1xf32> to vector<16x32xf32>
    %132 = arith.mulf %127, %131 : vector<16x32xf32>
    %c5 = arith.constant 5 : index
    %c0_49 = arith.constant 0 : index
    %133 = vector.load %arg6[%c5, %c0_49] : memref<8x64xf32, #tpu.memory_space<vmem>>, vector<1x32xf32>
    %134 = vector.broadcast %133 : vector<1x32xf32> to vector<16x32xf32>
    %135 = arith.mulf %132, %134 : vector<16x32xf32>
    %c6 = arith.constant 6 : index
    %c0_50 = arith.constant 0 : index
    %136 = vector.load %arg6[%c6, %c0_50] : memref<8x64xf32, #tpu.memory_space<vmem>>, vector<1x32xf32>
    %137 = vector.broadcast %136 : vector<1x32xf32> to vector<16x32xf32>
    %138 = arith.addf %135, %137 : vector<16x32xf32>
    %c0_51 = arith.constant 0 : index
    %c0_52 = arith.constant 0 : index
    %139 = vector.load %arg8[%c0_51, %c0_52] : memref<16x32xf32, #tpu.memory_space<vmem>>, vector<16x32xf32>
    tpu.vector_store %arg8[%c0_51, %c0_52], %138 {strides = array<i32>} : memref<16x32xf32, #tpu.memory_space<vmem>>, vector<16x32xf32>,
    return
  }
}

</mosaic_0001>

<llo_original>
// kernel: base_transformer_layer.1
$region0: #{base_transformer_layer.1}
  #allocation0 [shape = 'u32[]', space=smem, size = 0x4, offset = 0x4, fixed_abs, tag = 'smem constant byte address 0x4 - core index']
  #allocation1 [shape = 'u32[144,128]{1,0:T(1,128)}', space=vmem, size = 0x12000, scoped, tag = 'internal scratch']
  %s0 = inlined_call_operand.vmem [shape: f32[16,32], index: 0, kind: input, shape index: {}]
  %s1 = inlined_call_operand.vmem [shape: f32[96,32], index: 1, kind: input, shape index: {}]
  %s2 = inlined_call_operand.vmem [shape: f32[96,1], index: 2, kind: input, shape index: {}]
  %s3 = inlined_call_operand.vmem [shape: f32[32,32], index: 3, kind: input, shape index: {}]
  %s4 = inlined_call_operand.vmem [shape: f32[32,64], index: 4, kind: input, shape index: {}]
  %s5 = inlined_call_operand.vmem [shape: f32[64,32], index: 5, kind: input, shape index: {}]
  %s6 = inlined_call_operand.vmem [shape: f32[8,64], index: 6, kind: input, shape index: {}]
  %s7 = inlined_call_operand.vmem [shape: f32[16,16], index: 7, kind: input, shape index: {}]
  %s8 = inlined_call_operand.hbm [shape: f32[16,32], index: 8, kind: output, shape index: {}]
  %s9 = sld [smem:[#allocation0]]
  $region42: #{base_transformer_layer.1} parent=0
    _
  %s11 = ssub.s32 1, %s9
  %s12 = scalar_select 0, %s11, %s9
  $region1: #{base_transformer_layer.1} parent=0
    #allocation2 [shape = 'u8[8192]{0}', space=vmem, size = 0x2000, scoped, tag = 'output window, operand 0, single buffered']
    #allocation3 [shape = 's32[1]{0}', space=sflag, size = 0x4, scoped, tag = 'scoped memory for base_transformer_layer.1']
    %13 = vsyncpa [#allocation3], 0
    // Predicated region
    $region2: #{base_transformer_layer.1} parent=1 // pred_check
      _
    $region3: #{base_transformer_layer.1} parent=1 // pred_check_branch
      %15 = sbr.rel (0) target = $region5
    $region4: #{base_transformer_layer.1} parent=1 // pred_region
      _
    $region5: #{base_transformer_layer.1} parent=1 // pred_fallthru
      _
    // Predicated region
    $region6: #{base_transformer_layer.1} parent=1 // pred_check
      _
    $region7: #{base_transformer_layer.1} parent=1 // pred_check_branch
      %17 = sbr.rel (0) target = $region9
    $region8: #{base_transformer_layer.1} parent=1 // pred_region
      _
    $region9: #{base_transformer_layer.1} parent=1 // pred_fallthru
      _
    // Predicated region
    $region10: #{base_transformer_layer.1} parent=1 // pred_check
      _
    $region11: #{base_transformer_layer.1} parent=1 // pred_check_branch
      %19 = sbr.rel (0) target = $region13
    $region12: #{base_transformer_layer.1} parent=1 // pred_region
      _
    $region13: #{base_transformer_layer.1} parent=1 // pred_fallthru
      _
    // Predicated region
    $region14: #{base_transformer_layer.1} parent=1 // pred_check
      _
    $region15: #{base_transformer_layer.1} parent=1 // pred_check_branch
      %21 = sbr.rel (0) target = $region17
    $region16: #{base_transformer_layer.1} parent=1 // pred_region
      _
    $region17: #{base_transformer_layer.1} parent=1 // pred_fallthru
      _
    // Predicated region
    $region18: #{base_transformer_layer.1} parent=1 // pred_check
      _
    $region19: #{base_transformer_layer.1} parent=1 // pred_check_branch
      %23 = sbr.rel (0) target = $region21
    $region20: #{base_transformer_layer.1} parent=1 // pred_region
      _
    $region21: #{base_transformer_layer.1} parent=1 // pred_fallthru
      _
    // Predicated region
    $region22: #{base_transformer_layer.1} parent=1 // pred_check
      _
    $region23: #{base_transformer_layer.1} parent=1 // pred_check_branch
      %25 = sbr.rel (0) target = $region25
    $region24: #{base_transformer_layer.1} parent=1 // pred_region
      _
    $region25: #{base_transformer_layer.1} parent=1 // pred_fallthru
      _
    // Predicated region
    $region26: #{base_transformer_layer.1} parent=1 // pred_check
      _
    $region27: #{base_transformer_layer.1} parent=1 // pred_check_branch
      %27 = sbr.rel (0) target = $region29
    $region28: #{base_transformer_layer.1} parent=1 // pred_region
      _
    $region29: #{base_transformer_layer.1} parent=1 // pred_fallthru
      _
    // Predicated region
    $region30: #{base_transformer_layer.1} parent=1 // pred_check
      _
    $region31: #{base_transformer_layer.1} parent=1 // pred_check_branch
      %29 = sbr.rel (0) target = $region33
    $region32: #{base_transformer_layer.1} parent=1 // pred_region
      _
    $region33: #{base_transformer_layer.1} parent=1 // pred_fallthru
      _
    %v30 = vld [vmem:[%s0] sm:$0xff]
    %v31 = vld [vmem:[%s0 + $0x8] sm:$0xff]
    %v32 = vld [vmem:[%s1] sm:$0xff]
    %v33 = vld [vmem:[%s1 + $0x8] sm:$0xff]
    %v34 = vld [vmem:[%s1 + $0x10] sm:$0xff]
    %v35 = vld [vmem:[%s1 + $0x18] sm:$0xff]
    %v36 = vld [vmem:[%s1 + $0x20] sm:$0xff]
    %v37 = vld [vmem:[%s1 + $0x28] sm:$0xff]
    %v38 = vld [vmem:[%s1 + $0x30] sm:$0xff]
    %v39 = vld [vmem:[%s1 + $0x38] sm:$0xff]
    %v40 = vld [vmem:[%s1 + $0x40] sm:$0xff]
    %v41 = vld [vmem:[%s1 + $0x48] sm:$0xff]
    %v42 = vld [vmem:[%s1 + $0x50] sm:$0xff]
    %v43 = vld [vmem:[%s1 + $0x58] sm:$0xff]
    %v44 = vld [vmem:[%s2] sm:$0xff]
    %v45 = vld [vmem:[%s2 + $0x8] sm:$0xff]
    %v46 = vld [vmem:[%s2 + $0x10] sm:$0xff]
    %v47 = vld [vmem:[%s2 + $0x18] sm:$0xff]
    %v48 = vld [vmem:[%s2 + $0x20] sm:$0xff]
    %v49 = vld [vmem:[%s2 + $0x28] sm:$0xff]
    %v50 = vld [vmem:[%s2 + $0x30] sm:$0xff]
    %v51 = vld [vmem:[%s2 + $0x38] sm:$0xff]
    %v52 = vld [vmem:[%s2 + $0x40] sm:$0xff]
    %v53 = vld [vmem:[%s2 + $0x48] sm:$0xff]
    %v54 = vld [vmem:[%s2 + $0x50] sm:$0xff]
    %v55 = vld [vmem:[%s2 + $0x58] sm:$0xff]
    %57 = vset.pattern.permute.xlu0 0
    %58 = vperm.xlu0 %57, %v44
    %v59 = vpop.permute.xlu0 %58
    %62 = vset.pattern.permute.xlu0 0
    %63 = vperm.xlu0 %62, %v45
    %v64 = vpop.permute.xlu0 %63
    %67 = vset.pattern.permute.xlu0 0
    %68 = vperm.xlu0 %67, %v46
    %v69 = vpop.permute.xlu0 %68
    %72 = vset.pattern.permute.xlu0 0
    %73 = vperm.xlu0 %72, %v47
    %v74 = vpop.permute.xlu0 %73
    %77 = vset.pattern.permute.xlu0 0
    %78 = vperm.xlu0 %77, %v48
    %v79 = vpop.permute.xlu0 %78
    %82 = vset.pattern.permute.xlu0 0
    %83 = vperm.xlu0 %82, %v49
    %v84 = vpop.permute.xlu0 %83
    %87 = vset.pattern.permute.xlu0 0
    %88 = vperm.xlu0 %87, %v50
    %v89 = vpop.permute.xlu0 %88
    %92 = vset.pattern.permute.xlu0 0
    %93 = vperm.xlu0 %92, %v51
    %v94 = vpop.permute.xlu0 %93
    %97 = vset.pattern.permute.xlu0 0
    %98 = vperm.xlu0 %97, %v52
    %v99 = vpop.permute.xlu0 %98
    %102 = vset.pattern.permute.xlu0 0
    %103 = vperm.xlu0 %102, %v53
    %v104 = vpop.permute.xlu0 %103
    %107 = vset.pattern.permute.xlu0 0
    %108 = vperm.xlu0 %107, %v54
    %v109 = vpop.permute.xlu0 %108
    %112 = vset.pattern.permute.xlu0 0
    %113 = vperm.xlu0 %112, %v55
    %v114 = vpop.permute.xlu0 %113
    %vm116 = vcmask 261120
    %v118 = vsel %vm116, %v32, 0
    %v121 = vsel %vm116, %v33, 0
    %v124 = vsel %vm116, %v34, 0
    %v127 = vsel %vm116, %v35, 0
    %v130 = vsel %vm116, %v36, 0
    %v133 = vsel %vm116, %v37, 0
    %v136 = vsel %vm116, %v38, 0
    %v139 = vsel %vm116, %v39, 0
    %v142 = vsel %vm116, %v40, 0
    %v145 = vsel %vm116, %v41, 0
    %v148 = vsel %vm116, %v42, 0
    %v151 = vsel %vm116, %v43, 0
    %v154 = vsel %vm116, %v30, 0
    %v157 = vsel %vm116, %v31, 0
    %159 = vmatprep.subr.mxu0 0.0
    %160 = vmatpush1.xpose.msra.mxu0 0.0
    %161 = vmatprep.subr.mxu0 0.0
    %162 = vmatpush1.xpose.msra.mxu0 0.0
    %163 = vmatprep.subr.mxu0 0.0
    %164 = vmatpush1.xpose.msra.mxu0 0.0
    %165 = vmatprep.subr.mxu0 0.0
    %166 = vmatpush1.xpose.msra.mxu0 0.0
    %167 = vmatprep.subr.mxu0 0.0
    %168 = vmatpush1.xpose.msra.mxu0 0.0
    %169 = vmatprep.subr.mxu0 0.0
    %170 = vmatpush1.xpose.msra.mxu0 0.0
    %171 = vmatprep.subr.mxu0 0.0
    %172 = vmatpush1.xpose.msra.mxu0 0.0
    %173 = vmatprep.subr.mxu0 0.0
    %174 = vmatpush1.xpose.msra.mxu0 0.0
    %175 = vmatprep.subr.mxu0 0.0
    %176 = vmatpush1.xpose.msra.mxu0 0.0
    %177 = vmatprep.subr.mxu0 0.0
    %178 = vmatpush1.xpose.msra.mxu0 0.0
    %179 = vmatprep.subr.mxu0 0.0
    %180 = vmatpush1.xpose.msra.mxu0 0.0
    %181 = vmatprep.subr.mxu0 0.0
    %182 = vmatpush1.xpose.msra.mxu0 0.0
    %183 = vmatprep.subr.mxu0 0.0
    %184 = vmatpush1.xpose.msra.mxu0 0.0
    %185 = vmatprep.subr.mxu0 0.0
    %186 = vmatpush1.xpose.msra.mxu0 0.0
    %187 = vmatprep.subr.mxu0 0.0
    %188 = vmatpush1.xpose.msra.mxu0 %v157
    %189 = vmatprep.subr.mxu0 0.0
    %190 = vmatpush1.xpose.msra.mxu0 %v154
    %191 = vmatprep.subr.mxu0 0.0
    %192 = vmatpush2.xpose.msra.mxu0 0.0
    %193 = vmatprep.subr.mxu0 0.0
    %194 = vmatpush2.xpose.msra.mxu0 0.0
    %195 = vmatprep.subr.mxu0 0.0
    %196 = vmatpush2.xpose.msra.mxu0 0.0
    %197 = vmatprep.subr.mxu0 0.0
    %198 = vmatpush2.xpose.msra.mxu0 0.0
    %199 = vmatprep.subr.mxu0 0.0
    %200 = vmatpush2.xpose.msra.mxu0 0.0
    %201 = vmatprep.subr.mxu0 0.0
    %202 = vmatpush2.xpose.msra.mxu0 0.0
    %203 = vmatprep.subr.mxu0 0.0
    %204 = vmatpush2.xpose.msra.mxu0 0.0
    %205 = vmatprep.subr.mxu0 0.0
    %206 = vmatpush2.xpose.msra.mxu0 0.0
    %207 = vmatprep.subr.mxu0 0.0
    %208 = vmatpush2.xpose.msra.mxu0 0.0
    %209 = vmatprep.subr.mxu0 0.0
    %210 = vmatpush2.xpose.msra.mxu0 0.0
    %211 = vmatprep.subr.mxu0 0.0
    %212 = vmatpush2.xpose.msra.mxu0 0.0
    %213 = vmatprep.subr.mxu0 0.0
    %214 = vmatpush2.xpose.msra.mxu0 0.0
    %215 = vmatprep.subr.mxu0 0.0
    %216 = vmatpush2.xpose.msra.mxu0 0.0
    %217 = vmatprep.subr.mxu0 0.0
    %218 = vmatpush2.xpose.msra.mxu0 0.0
    %219 = vmatprep.subr.mxu0 0.0
    %220 = vmatpush2.xpose.msra.mxu0 0.0
    %221 = vmatprep.subr.mxu0 0.0
    %222 = vmatpush2.xpose.msra.mxu0 0.0
    %223 = vmatprep.mubr.f32.mxu0 0.0
    %224 = vmatmul.mubr.f32.gmra.mxu0 %v118
    %v225 = vpop.f32.mrf.mxu0
    %v226 = vadd.f32 %v59, %v225
    %v227 = vpop.f32.mrf.mxu0
    %228 = vmatprep.mubr.f32.mxu0 0.0
    %229 = vmatmul.mubr.f32.gmra.mxu0 %v121
    %v230 = vpop.f32.mrf.mxu0
    %v231 = vadd.f32 %v64, %v230
    %v232 = vpop.f32.mrf.mxu0
    %233 = vmatprep.mubr.f32.mxu0 0.0
    %234 = vmatmul.mubr.f32.gmra.mxu0 %v124
    %v235 = vpop.f32.mrf.mxu0
    %v236 = vadd.f32 %v69, %v235
    %v237 = vpop.f32.mrf.mxu0
    %238 = vmatprep.mubr.f32.mxu0 0.0
    %239 = vmatmul.mubr.f32.gmra.mxu0 %v127
    %v240 = vpop.f32.mrf.mxu0
    %v241 = vadd.f32 %v74, %v240
    %v242 = vpop.f32.mrf.mxu0
    %243 = vmatprep.mubr.f32.mxu0 0.0
    %244 = vmatmul.mubr.f32.gmra.mxu0 %v130
    %v245 = vpop.f32.mrf.mxu0
    %v246 = vadd.f32 %v79, %v245
    %v247 = vpop.f32.mrf.mxu0
    %248 = vmatprep.mubr.f32.mxu0 0.0
    %249 = vmatmul.mubr.f32.gmra.mxu0 %v133
    %v250 = vpop.f32.mrf.mxu0
    %v251 = vadd.f32 %v84, %v250
    %v252 = vpop.f32.mrf.mxu0
    %253 = vmatprep.mubr.f32.mxu0 0.0
    %254 = vmatmul.mubr.f32.gmra.mxu0 %v136
    %v255 = vpop.f32.mrf.mxu0
    %v256 = vadd.f32 %v89, %v255
    %v257 = vpop.f32.mrf.mxu0
    %258 = vmatprep.mubr.f32.mxu0 0.0
    %259 = vmatmul.mubr.f32.gmra.mxu0 %v139
    %v260 = vpop.f32.mrf.mxu0
    %v261 = vadd.f32 %v94, %v260
    %v262 = vpop.f32.mrf.mxu0
    %263 = vmatprep.mubr.f32.mxu0 0.0
    %264 = vmatmul.mubr.f32.gmra.mxu0 %v142
    %v265 = vpop.f32.mrf.mxu0
    %v266 = vadd.f32 %v99, %v265
    %v267 = vpop.f32.mrf.mxu0
    %268 = vmatprep.mubr.f32.mxu0 0.0
    %269 = vmatmul.mubr.f32.gmra.mxu0 %v145
    %v270 = vpop.f32.mrf.mxu0
    %v271 = vadd.f32 %v104, %v270
    %v272 = vpop.f32.mrf.mxu0
    %273 = vmatprep.mubr.f32.mxu0 0.0
    %274 = vmatmul.mubr.f32.gmra.mxu0 %v148
    %v275 = vpop.f32.mrf.mxu0
    %v276 = vadd.f32 %v109, %v275
    %v277 = vpop.f32.mrf.mxu0
    %278 = vmatprep.mubr.f32.mxu0 0.0
    %279 = vmatmul.mubr.f32.gmra.mxu0 %v151
    %v280 = vpop.f32.mrf.mxu0
    %v281 = vadd.f32 %v114, %v280
    %v282 = vpop.f32.mrf.mxu0
    %283 = vdwg.mxu0
    %v284 = vld [vmem:[%s7] sm:$0xff]
    %v285 = vld [vmem:[%s7 + $0x8] sm:$0xff]
    %286 = vxpose.xlu0.b32.start [1/16] %v226, 128
    %287 = vxpose.xlu0.b32.cont [2/16] 0.0, 128
    %288 = vxpose.xlu0.b32.cont [3/16] 0.0, 128
    %289 = vxpose.xlu0.b32.cont [4/16] 0.0, 128
    %290 = vxpose.xlu0.b32.cont [5/16] 0.0, 128
    %291 = vxpose.xlu0.b32.cont [6/16] 0.0, 128
    %292 = vxpose.xlu0.b32.cont [7/16] 0.0, 128
    %293 = vxpose.xlu0.b32.cont [8/16] 0.0, 128
    %294 = vxpose.xlu0.b32.cont [9/16] 0.0, 128
    %295 = vxpose.xlu0.b32.cont [10/16] 0.0, 128
    %296 = vxpose.xlu0.b32.cont [11/16] 0.0, 128
    %297 = vxpose.xlu0.b32.cont [12/16] 0.0, 128
    %298 = vxpose.xlu0.b32.cont [13/16] 0.0, 128
    %299 = vxpose.xlu0.b32.cont [14/16] 0.0, 128
    %300 = vxpose.xlu0.b32.cont [15/16] 0.0, 128
    %301 = vxpose.xlu0.b32.end [16/16] 0.0, 128
    %v302 = vpop.trf.xlu0
    %v303 = vpop.trf.xlu0
    %v304 = vpop.trf.xlu0
    %v305 = vpop.trf.xlu0
    %v306 = vpop.trf.xlu0
    %v307 = vpop.trf.xlu0
    %v308 = vpop.trf.xlu0
    %v309 = vpop.trf.xlu0
    %v310 = vpop.trf.xlu0
    %v311 = vpop.trf.xlu0
    %v312 = vpop.trf.xlu0
    %v313 = vpop.trf.xlu0
    %v314 = vpop.trf.xlu0
    %v315 = vpop.trf.xlu0
    %v316 = vpop.trf.xlu0
    %v317 = vpop.trf.xlu0
    %vm318 = vcmask 64512
    %v320 = vsel %vm318, %v302, 0
    %v323 = vsel %vm318, %v303, 0
    %325 = vmatprep.subr.mxu0 0.0
    %326 = vmatpush1.msra.mxu0 0.0
    %327 = vmatprep.subr.mxu0 0.0
    %328 = vmatpush1.msra.mxu0 0.0
    %329 = vmatprep.subr.mxu0 0.0
    %330 = vmatpush1.msra.mxu0 0.0
    %331 = vmatprep.subr.mxu0 0.0
    %332 = vmatpush1.msra.mxu0 0.0
    %333 = vmatprep.subr.mxu0 0.0
    %334 = vmatpush1.msra.mxu0 0.0
    %335 = vmatprep.subr.mxu0 0.0
    %336 = vmatpush1.msra.mxu0 0.0
    %337 = vmatprep.subr.mxu0 0.0
    %338 = vmatpush1.msra.mxu0 0.0
    %339 = vmatprep.subr.mxu0 0.0
    %340 = vmatpush1.msra.mxu0 0.0
    %341 = vmatprep.subr.mxu0 0.0
    %342 = vmatpush1.msra.mxu0 0.0
    %343 = vmatprep.subr.mxu0 0.0
    %344 = vmatpush1.msra.mxu0 0.0
    %345 = vmatprep.subr.mxu0 0.0
    %346 = vmatpush1.msra.mxu0 0.0
    %347 = vmatprep.subr.mxu0 0.0
    %348 = vmatpush1.msra.mxu0 0.0
    %349 = vmatprep.subr.mxu0 0.0
    %350 = vmatpush1.msra.mxu0 0.0
    %351 = vmatprep.subr.mxu0 0.0
    %352 = vmatpush1.msra.mxu0 0.0
    %353 = vmatprep.subr.mxu0 0.0
    %354 = vmatpush1.msra.mxu0 0.0
    %355 = vmatprep.subr.mxu0 0.0
    %356 = vmatpush1.msra.mxu0 %v246
    %357 = vmatprep.subr.mxu0 0.0
    %358 = vmatpush2.msra.mxu0 0.0
    %359 = vmatprep.subr.mxu0 0.0
    %360 = vmatpush2.msra.mxu0 0.0
    %361 = vmatprep.subr.mxu0 0.0
    %362 = vmatpush2.msra.mxu0 0.0
    %363 = vmatprep.subr.mxu0 0.0
    %364 = vmatpush2.msra.mxu0 0.0
    %365 = vmatprep.subr.mxu0 0.0
    %366 = vmatpush2.msra.mxu0 0.0
    %367 = vmatprep.subr.mxu0 0.0
    %368 = vmatpush2.msra.mxu0 0.0
    %369 = vmatprep.subr.mxu0 0.0
    %370 = vmatpush2.msra.mxu0 0.0
    %371 = vmatprep.subr.mxu0 0.0
    %372 = vmatpush2.msra.mxu0 0.0
    %373 = vmatprep.subr.mxu0 0.0
    %374 = vmatpush2.msra.mxu0 0.0
    %375 = vmatprep.subr.mxu0 0.0
    %376 = vmatpush2.msra.mxu0 0.0
    %377 = vmatprep.subr.mxu0 0.0
    %378 = vmatpush2.msra.mxu0 0.0
    %379 = vmatprep.subr.mxu0 0.0
    %380 = vmatpush2.msra.mxu0 0.0
    %381 = vmatprep.subr.mxu0 0.0
    %382 = vmatpush2.msra.mxu0 0.0
    %383 = vmatprep.subr.mxu0 0.0
    %384 = vmatpush2.msra.mxu0 0.0
    %385 = vmatprep.subr.mxu0 0.0
    %386 = vmatpush2.msra.mxu0 0.0
    %387 = vmatprep.subr.mxu0 0.0
    %388 = vmatpush2.msra.mxu0 0.0
    %389 = vmatprep.mubr.f32.mxu0 0.0
    %390 = vmatmul.mubr.f32.gmra.mxu0 %v320
    %v391 = vpop.f32.mrf.mxu0
    %v392 = vadd.f32 %v284, %v391
    %v393 = vpop.f32.mrf.mxu0
    %394 = vmatprep.mubr.f32.mxu0 0.0
    %395 = vmatmul.mubr.f32.gmra.mxu0 %v323
    %v396 = vpop.f32.mrf.mxu0
    %v397 = vadd.f32 %v285, %v396
    %v398 = vpop.f32.mrf.mxu0
    %399 = vdwg.mxu0
    %vm400 = vcmask 130048
    %v401 = vsel %vm400, %v392, -inf
    %402 = vmax.xlane.f32.xlu0 %v401
    %v403 = vpop.xlane.xlu0 %402
    %v404 = vsel %vm400, %v397, -inf
    %405 = vmax.xlane.f32.xlu0 %v404
    %v406 = vpop.xlane.xlu0 %405
    %v407 = vsub.f32 %v392, %v403
    %v408 = vsub.f32 %v397, %v406
    %v409 = vmul.f32 %v407, 1.442695
    %v410 = vpow.pop %v409
    %v411 = vmul.f32 %v408, 1.442695
    %v412 = vpow.pop %v411
    %v413 = vsel %vm400, %v410, 0.0
    %414 = vadd.xlane.f32.xlu0 %v413
    %v415 = vpop.xlane.xlu0 %414
    %v416 = vsel %vm400, %v412, 0.0
    %417 = vadd.xlane.f32.xlu0 %v416
    %v418 = vpop.xlane.xlu0 %417
    %v419 = vrcp.pop %v415
    %v420 = vrcp.pop %v418
    %v421 = vmul.f32 %v410, %v419
    %v422 = vmul.f32 %v412, %v420
    %v424 = vsel %vm400, %v421, 0
    %v427 = vsel %vm400, %v422, 0
    %v430 = vsel %vm400, %v266, 0
    %432 = vmatprep.subr.mxu0 0.0
    %433 = vmatpush1.xpose.msra.mxu0 0.0
    %434 = vmatprep.subr.mxu0 0.0
    %435 = vmatpush1.xpose.msra.mxu0 0.0
    %436 = vmatprep.subr.mxu0 0.0
    %437 = vmatpush1.xpose.msra.mxu0 0.0
    %438 = vmatprep.subr.mxu0 0.0
    %439 = vmatpush1.xpose.msra.mxu0 0.0
    %440 = vmatprep.subr.mxu0 0.0
    %441 = vmatpush1.xpose.msra.mxu0 0.0
    %442 = vmatprep.subr.mxu0 0.0
    %443 = vmatpush1.xpose.msra.mxu0 0.0
    %444 = vmatprep.subr.mxu0 0.0
    %445 = vmatpush1.xpose.msra.mxu0 0.0
    %446 = vmatprep.subr.mxu0 0.0
    %447 = vmatpush1.xpose.msra.mxu0 0.0
    %448 = vmatprep.subr.mxu0 0.0
    %449 = vmatpush1.xpose.msra.mxu0 0.0
    %450 = vmatprep.subr.mxu0 0.0
    %451 = vmatpush1.xpose.msra.mxu0 0.0
    %452 = vmatprep.subr.mxu0 0.0
    %453 = vmatpush1.xpose.msra.mxu0 0.0
    %454 = vmatprep.subr.mxu0 0.0
    %455 = vmatpush1.xpose.msra.mxu0 0.0
    %456 = vmatprep.subr.mxu0 0.0
    %457 = vmatpush1.xpose.msra.mxu0 0.0
    %458 = vmatprep.subr.mxu0 0.0
    %459 = vmatpush1.xpose.msra.mxu0 0.0
    %460 = vmatprep.subr.mxu0 0.0
    %461 = vmatpush1.xpose.msra.mxu0 0.0
    %462 = vmatprep.subr.mxu0 0.0
    %463 = vmatpush1.xpose.msra.mxu0 %v430
    %464 = vmatprep.subr.mxu0 0.0
    %465 = vmatpush2.xpose.msra.mxu0 0.0
    %466 = vmatprep.subr.mxu0 0.0
    %467 = vmatpush2.xpose.msra.mxu0 0.0
    %468 = vmatprep.subr.mxu0 0.0
    %469 = vmatpush2.xpose.msra.mxu0 0.0
    %470 = vmatprep.subr.mxu0 0.0
    %471 = vmatpush2.xpose.msra.mxu0 0.0
    %472 = vmatprep.subr.mxu0 0.0
    %473 = vmatpush2.xpose.msra.mxu0 0.0
    %474 = vmatprep.subr.mxu0 0.0
    %475 = vmatpush2.xpose.msra.mxu0 0.0
    %476 = vmatprep.subr.mxu0 0.0
    %477 = vmatpush2.xpose.msra.mxu0 0.0
    %478 = vmatprep.subr.mxu0 0.0
    %479 = vmatpush2.xpose.msra.mxu0 0.0
    %480 = vmatprep.subr.mxu0 0.0
    %481 = vmatpush2.xpose.msra.mxu0 0.0
    %482 = vmatprep.subr.mxu0 0.0
    %483 = vmatpush2.xpose.msra.mxu0 0.0
    %484 = vmatprep.subr.mxu0 0.0
    %485 = vmatpush2.xpose.msra.mxu0 0.0
    %486 = vmatprep.subr.mxu0 0.0
    %487 = vmatpush2.xpose.msra.mxu0 0.0
    %488 = vmatprep.subr.mxu0 0.0
    %489 = vmatpush2.xpose.msra.mxu0 0.0
    %490 = vmatprep.subr.mxu0 0.0
    %491 = vmatpush2.xpose.msra.mxu0 0.0
    %492 = vmatprep.subr.mxu0 0.0
    %493 = vmatpush2.xpose.msra.mxu0 0.0
    %494 = vmatprep.subr.mxu0 0.0
    %495 = vmatpush2.xpose.msra.mxu0 0.0
    %496 = vmatprep.mubr.f32.mxu0 0.0
    %497 = vmatmul.mubr.f32.gmra.mxu0 %v424
    %v498 = vpop.f32.mrf.mxu0
    %v499 = vadd.f32 0.0, %v498
    %v500 = vpop.f32.mrf.mxu0
    %501 = vmatprep.mubr.f32.mxu0 0.0
    %502 = vmatmul.mubr.f32.gmra.mxu0 %v427
    %v503 = vpop.f32.mrf.mxu0
    %v504 = vadd.f32 0.0, %v503
    %v505 = vpop.f32.mrf.mxu0
    %506 = vdwg.mxu0
    %507 = vxpose.xlu0.b32.start [1/16] %v231, 128
    %508 = vxpose.xlu0.b32.cont [2/16] 0.0, 128
    %509 = vxpose.xlu0.b32.cont [3/16] 0.0, 128
    %510 = vxpose.xlu0.b32.cont [4/16] 0.0, 128
    %511 = vxpose.xlu0.b32.cont [5/16] 0.0, 128
    %512 = vxpose.xlu0.b32.cont [6/16] 0.0, 128
    %513 = vxpose.xlu0.b32.cont [7/16] 0.0, 128
    %514 = vxpose.xlu0.b32.cont [8/16] 0.0, 128
    %515 = vxpose.xlu0.b32.cont [9/16] 0.0, 128
    %516 = vxpose.xlu0.b32.cont [10/16] 0.0, 128
    %517 = vxpose.xlu0.b32.cont [11/16] 0.0, 128
    %518 = vxpose.xlu0.b32.cont [12/16] 0.0, 128
    %519 = vxpose.xlu0.b32.cont [13/16] 0.0, 128
    %520 = vxpose.xlu0.b32.cont [14/16] 0.0, 128
    %521 = vxpose.xlu0.b32.cont [15/16] 0.0, 128
    %522 = vxpose.xlu0.b32.end [16/16] 0.0, 128
    %v523 = vpop.trf.xlu0
    %v524 = vpop.trf.xlu0
    %v525 = vpop.trf.xlu0
    %v526 = vpop.trf.xlu0
    %v527 = vpop.trf.xlu0
    %v528 = vpop.trf.xlu0
    %v529 = vpop.trf.xlu0
    %v530 = vpop.trf.xlu0
    %v531 = vpop.trf.xlu0
    %v532 = vpop.trf.xlu0
    %v533 = vpop.trf.xlu0
    %v534 = vpop.trf.xlu0
    %v535 = vpop.trf.xlu0
    %v536 = vpop.trf.xlu0
    %v537 = vpop.trf.xlu0
    %v538 = vpop.trf.xlu0
    %v540 = vsel %vm318, %v523, 0
    %v543 = vsel %vm318, %v524, 0
    %545 = vmatprep.subr.mxu0 0.0
    %546 = vmatpush1.msra.mxu0 0.0
    %547 = vmatprep.subr.mxu0 0.0
    %548 = vmatpush1.msra.mxu0 0.0
    %549 = vmatprep.subr.mxu0 0.0
    %550 = vmatpush1.msra.mxu0 0.0
    %551 = vmatprep.subr.mxu0 0.0
    %552 = vmatpush1.msra.mxu0 0.0
    %553 = vmatprep.subr.mxu0 0.0
    %554 = vmatpush1.msra.mxu0 0.0
    %555 = vmatprep.subr.mxu0 0.0
    %556 = vmatpush1.msra.mxu0 0.0
    %557 = vmatprep.subr.mxu0 0.0
    %558 = vmatpush1.msra.mxu0 0.0
    %559 = vmatprep.subr.mxu0 0.0
    %560 = vmatpush1.msra.mxu0 0.0
    %561 = vmatprep.subr.mxu0 0.0
    %562 = vmatpush1.msra.mxu0 0.0
    %563 = vmatprep.subr.mxu0 0.0
    %564 = vmatpush1.msra.mxu0 0.0
    %565 = vmatprep.subr.mxu0 0.0
    %566 = vmatpush1.msra.mxu0 0.0
    %567 = vmatprep.subr.mxu0 0.0
    %568 = vmatpush1.msra.mxu0 0.0
    %569 = vmatprep.subr.mxu0 0.0
    %570 = vmatpush1.msra.mxu0 0.0
    %571 = vmatprep.subr.mxu0 0.0
    %572 = vmatpush1.msra.mxu0 0.0
    %573 = vmatprep.subr.mxu0 0.0
    %574 = vmatpush1.msra.mxu0 0.0
    %575 = vmatprep.subr.mxu0 0.0
    %576 = vmatpush1.msra.mxu0 %v251
    %577 = vmatprep.subr.mxu0 0.0
    %578 = vmatpush2.msra.mxu0 0.0
    %579 = vmatprep.subr.mxu0 0.0
    %580 = vmatpush2.msra.mxu0 0.0
    %581 = vmatprep.subr.mxu0 0.0
    %582 = vmatpush2.msra.mxu0 0.0
    %583 = vmatprep.subr.mxu0 0.0
    %584 = vmatpush2.msra.mxu0 0.0
    %585 = vmatprep.subr.mxu0 0.0
    %586 = vmatpush2.msra.mxu0 0.0
    %587 = vmatprep.subr.mxu0 0.0
    %588 = vmatpush2.msra.mxu0 0.0
    %589 = vmatprep.subr.mxu0 0.0
    %590 = vmatpush2.msra.mxu0 0.0
    %591 = vmatprep.subr.mxu0 0.0
    %592 = vmatpush2.msra.mxu0 0.0
    %593 = vmatprep.subr.mxu0 0.0
    %594 = vmatpush2.msra.mxu0 0.0
    %595 = vmatprep.subr.mxu0 0.0
    %596 = vmatpush2.msra.mxu0 0.0
    %597 = vmatprep.subr.mxu0 0.0
    %598 = vmatpush2.msra.mxu0 0.0
    %599 = vmatprep.subr.mxu0 0.0
    %600 = vmatpush2.msra.mxu0 0.0
    %601 = vmatprep.subr.mxu0 0.0
    %602 = vmatpush2.msra.mxu0 0.0
    %603 = vmatprep.subr.mxu0 0.0
    %604 = vmatpush2.msra.mxu0 0.0
    %605 = vmatprep.subr.mxu0 0.0
    %606 = vmatpush2.msra.mxu0 0.0
    %607 = vmatprep.subr.mxu0 0.0
    %608 = vmatpush2.msra.mxu0 0.0
    %609 = vmatprep.mubr.f32.mxu0 0.0
    %610 = vmatmul.mubr.f32.gmra.mxu0 %v540
    %v611 = vpop.f32.mrf.mxu0
    %v612 = vadd.f32 %v284, %v611
    %v613 = vpop.f32.mrf.mxu0
    %614 = vmatprep.mubr.f32.mxu0 0.0
    %615 = vmatmul.mubr.f32.gmra.mxu0 %v543
    %v616 = vpop.f32.mrf.mxu0
    %v617 = vadd.f32 %v285, %v616
    %v618 = vpop.f32.mrf.mxu0
    %619 = vdwg.mxu0
    %v620 = vsel %vm400, %v612, -inf
    %621 = vmax.xlane.f32.xlu0 %v620
    %v622 = vpop.xlane.xlu0 %621
    %v623 = vsel %vm400, %v617, -inf
    %624 = vmax.xlane.f32.xlu0 %v623
    %v625 = vpop.xlane.xlu0 %624
    %v626 = vsub.f32 %v612, %v622
    %v627 = vsub.f32 %v617, %v625
    %v628 = vmul.f32 %v626, 1.442695
    %v629 = vpow.pop %v628
    %v630 = vmul.f32 %v627, 1.442695
    %v631 = vpow.pop %v630
    %v632 = vsel %vm400, %v629, 0.0
    %633 = vadd.xlane.f32.xlu0 %v632
    %v634 = vpop.xlane.xlu0 %633
    %v635 = vsel %vm400, %v631, 0.0
    %636 = vadd.xlane.f32.xlu0 %v635
    %v637 = vpop.xlane.xlu0 %636
    %v638 = vrcp.pop %v634
    %v639 = vrcp.pop %v637
    %v640 = vmul.f32 %v629, %v638
    %v641 = vmul.f32 %v631, %v639
    %v643 = vsel %vm400, %v640, 0
    %v646 = vsel %vm400, %v641, 0
    %v649 = vsel %vm400, %v271, 0
    %651 = vmatprep.subr.mxu0 0.0
    %652 = vmatpush1.xpose.msra.mxu0 0.0
    %653 = vmatprep.subr.mxu0 0.0
    %654 = vmatpush1.xpose.msra.mxu0 0.0
    %655 = vmatprep.subr.mxu0 0.0
    %656 = vmatpush1.xpose.msra.mxu0 0.0
    %657 = vmatprep.subr.mxu0 0.0
    %658 = vmatpush1.xpose.msra.mxu0 0.0
    %659 = vmatprep.subr.mxu0 0.0
    %660 = vmatpush1.xpose.msra.mxu0 0.0
    %661 = vmatprep.subr.mxu0 0.0
    %662 = vmatpush1.xpose.msra.mxu0 0.0
    %663 = vmatprep.subr.mxu0 0.0
    %664 = vmatpush1.xpose.msra.mxu0 0.0
    %665 = vmatprep.subr.mxu0 0.0
    %666 = vmatpush1.xpose.msra.mxu0 0.0
    %667 = vmatprep.subr.mxu0 0.0
    %668 = vmatpush1.xpose.msra.mxu0 0.0
    %669 = vmatprep.subr.mxu0 0.0
    %670 = vmatpush1.xpose.msra.mxu0 0.0
    %671 = vmatprep.subr.mxu0 0.0
    %672 = vmatpush1.xpose.msra.mxu0 0.0
    %673 = vmatprep.subr.mxu0 0.0
    %674 = vmatpush1.xpose.msra.mxu0 0.0
    %675 = vmatprep.subr.mxu0 0.0
    %676 = vmatpush1.xpose.msra.mxu0 0.0
    %677 = vmatprep.subr.mxu0 0.0
    %678 = vmatpush1.xpose.msra.mxu0 0.0
    %679 = vmatprep.subr.mxu0 0.0
    %680 = vmatpush1.xpose.msra.mxu0 0.0
    %681 = vmatprep.subr.mxu0 0.0
    %682 = vmatpush1.xpose.msra.mxu0 %v649
    %683 = vmatprep.subr.mxu0 0.0
    %684 = vmatpush2.xpose.msra.mxu0 0.0
    %685 = vmatprep.subr.mxu0 0.0
    %686 = vmatpush2.xpose.msra.mxu0 0.0
    %687 = vmatprep.subr.mxu0 0.0
    %688 = vmatpush2.xpose.msra.mxu0 0.0
    %689 = vmatprep.subr.mxu0 0.0
    %690 = vmatpush2.xpose.msra.mxu0 0.0
    %691 = vmatprep.subr.mxu0 0.0
    %692 = vmatpush2.xpose.msra.mxu0 0.0
    %693 = vmatprep.subr.mxu0 0.0
    %694 = vmatpush2.xpose.msra.mxu0 0.0
    %695 = vmatprep.subr.mxu0 0.0
    %696 = vmatpush2.xpose.msra.mxu0 0.0
    %697 = vmatprep.subr.mxu0 0.0
    %698 = vmatpush2.xpose.msra.mxu0 0.0
    %699 = vmatprep.subr.mxu0 0.0
    %700 = vmatpush2.xpose.msra.mxu0 0.0
    %701 = vmatprep.subr.mxu0 0.0
    %702 = vmatpush2.xpose.msra.mxu0 0.0
    %703 = vmatprep.subr.mxu0 0.0
    %704 = vmatpush2.xpose.msra.mxu0 0.0
    %705 = vmatprep.subr.mxu0 0.0
    %706 = vmatpush2.xpose.msra.mxu0 0.0
    %707 = vmatprep.subr.mxu0 0.0
    %708 = vmatpush2.xpose.msra.mxu0 0.0
    %709 = vmatprep.subr.mxu0 0.0
    %710 = vmatpush2.xpose.msra.mxu0 0.0
    %711 = vmatprep.subr.mxu0 0.0
    %712 = vmatpush2.xpose.msra.mxu0 0.0
    %713 = vmatprep.subr.mxu0 0.0
    %714 = vmatpush2.xpose.msra.mxu0 0.0
    %715 = vmatprep.mubr.f32.mxu0 0.0
    %716 = vmatmul.mubr.f32.gmra.mxu0 %v643
    %v717 = vpop.f32.mrf.mxu0
    %v718 = vadd.f32 0.0, %v717
    %v719 = vpop.f32.mrf.mxu0
    %720 = vmatprep.mubr.f32.mxu0 0.0
    %721 = vmatmul.mubr.f32.gmra.mxu0 %v646
    %v722 = vpop.f32.mrf.mxu0
    %v723 = vadd.f32 0.0, %v722
    %v724 = vpop.f32.mrf.mxu0
    %725 = vdwg.mxu0
    %726 = vxpose.xlu0.b32.start [1/16] %v236, 128
    %727 = vxpose.xlu0.b32.cont [2/16] 0.0, 128
    %728 = vxpose.xlu0.b32.cont [3/16] 0.0, 128
    %729 = vxpose.xlu0.b32.cont [4/16] 0.0, 128
    %730 = vxpose.xlu0.b32.cont [5/16] 0.0, 128
    %731 = vxpose.xlu0.b32.cont [6/16] 0.0, 128
    %732 = vxpose.xlu0.b32.cont [7/16] 0.0, 128
    %733 = vxpose.xlu0.b32.cont [8/16] 0.0, 128
    %734 = vxpose.xlu0.b32.cont [9/16] 0.0, 128
    %735 = vxpose.xlu0.b32.cont [10/16] 0.0, 128
    %736 = vxpose.xlu0.b32.cont [11/16] 0.0, 128
    %737 = vxpose.xlu0.b32.cont [12/16] 0.0, 128
    %738 = vxpose.xlu0.b32.cont [13/16] 0.0, 128
    %739 = vxpose.xlu0.b32.cont [14/16] 0.0, 128
    %740 = vxpose.xlu0.b32.cont [15/16] 0.0, 128
    %741 = vxpose.xlu0.b32.end [16/16] 0.0, 128
    %v742 = vpop.trf.xlu0
    %v743 = vpop.trf.xlu0
    %v744 = vpop.trf.xlu0
    %v745 = vpop.trf.xlu0
    %v746 = vpop.trf.xlu0
    %v747 = vpop.trf.xlu0
    %v748 = vpop.trf.xlu0
    %v749 = vpop.trf.xlu0
    %v750 = vpop.trf.xlu0
    %v751 = vpop.trf.xlu0
    %v752 = vpop.trf.xlu0
    %v753 = vpop.trf.xlu0
    %v754 = vpop.trf.xlu0
    %v755 = vpop.trf.xlu0
    %v756 = vpop.trf.xlu0
    %v757 = vpop.trf.xlu0
    %v759 = vsel %vm318, %v742, 0
    %v762 = vsel %vm318, %v743, 0
    %764 = vmatprep.subr.mxu0 0.0
    %765 = vmatpush1.msra.mxu0 0.0
    %766 = vmatprep.subr.mxu0 0.0
    %767 = vmatpush1.msra.mxu0 0.0
    %768 = vmatprep.subr.mxu0 0.0
    %769 = vmatpush1.msra.mxu0 0.0
    %770 = vmatprep.subr.mxu0 0.0
    %771 = vmatpush1.msra.mxu0 0.0
    %772 = vmatprep.subr.mxu0 0.0
    %773 = vmatpush1.msra.mxu0 0.0
    %774 = vmatprep.subr.mxu0 0.0
    %775 = vmatpush1.msra.mxu0 0.0
    %776 = vmatprep.subr.mxu0 0.0
    %777 = vmatpush1.msra.mxu0 0.0
    %778 = vmatprep.subr.mxu0 0.0
    %779 = vmatpush1.msra.mxu0 0.0
    %780 = vmatprep.subr.mxu0 0.0
    %781 = vmatpush1.msra.mxu0 0.0
    %782 = vmatprep.subr.mxu0 0.0
    %783 = vmatpush1.msra.mxu0 0.0
    %784 = vmatprep.subr.mxu0 0.0
    %785 = vmatpush1.msra.mxu0 0.0
    %786 = vmatprep.subr.mxu0 0.0
    %787 = vmatpush1.msra.mxu0 0.0
    %788 = vmatprep.subr.mxu0 0.0
    %789 = vmatpush1.msra.mxu0 0.0
    %790 = vmatprep.subr.mxu0 0.0
    %791 = vmatpush1.msra.mxu0 0.0
    %792 = vmatprep.subr.mxu0 0.0
    %793 = vmatpush1.msra.mxu0 0.0
    %794 = vmatprep.subr.mxu0 0.0
    %795 = vmatpush1.msra.mxu0 %v256
    %796 = vmatprep.subr.mxu0 0.0
    %797 = vmatpush2.msra.mxu0 0.0
    %798 = vmatprep.subr.mxu0 0.0
    %799 = vmatpush2.msra.mxu0 0.0
    %800 = vmatprep.subr.mxu0 0.0
    %801 = vmatpush2.msra.mxu0 0.0
    %802 = vmatprep.subr.mxu0 0.0
    %803 = vmatpush2.msra.mxu0 0.0
    %804 = vmatprep.subr.mxu0 0.0
    %805 = vmatpush2.msra.mxu0 0.0
    %806 = vmatprep.subr.mxu0 0.0
    %807 = vmatpush2.msra.mxu0 0.0
    %808 = vmatprep.subr.mxu0 0.0
    %809 = vmatpush2.msra.mxu0 0.0
    %810 = vmatprep.subr.mxu0 0.0
    %811 = vmatpush2.msra.mxu0 0.0
    %812 = vmatprep.subr.mxu0 0.0
    %813 = vmatpush2.msra.mxu0 0.0
    %814 = vmatprep.subr.mxu0 0.0
    %815 = vmatpush2.msra.mxu0 0.0
    %816 = vmatprep.subr.mxu0 0.0
    %817 = vmatpush2.msra.mxu0 0.0
    %818 = vmatprep.subr.mxu0 0.0
    %819 = vmatpush2.msra.mxu0 0.0
    %820 = vmatprep.subr.mxu0 0.0
    %821 = vmatpush2.msra.mxu0 0.0
    %822 = vmatprep.subr.mxu0 0.0
    %823 = vmatpush2.msra.mxu0 0.0
    %824 = vmatprep.subr.mxu0 0.0
    %825 = vmatpush2.msra.mxu0 0.0
    %826 = vmatprep.subr.mxu0 0.0
    %827 = vmatpush2.msra.mxu0 0.0
    %828 = vmatprep.mubr.f32.mxu0 0.0
    %829 = vmatmul.mubr.f32.gmra.mxu0 %v759
    %v830 = vpop.f32.mrf.mxu0
    %v831 = vadd.f32 %v284, %v830
    %v832 = vpop.f32.mrf.mxu0
    %833 = vmatprep.mubr.f32.mxu0 0.0
    %834 = vmatmul.mubr.f32.gmra.mxu0 %v762
    %v835 = vpop.f32.mrf.mxu0
    %v836 = vadd.f32 %v285, %v835
    %v837 = vpop.f32.mrf.mxu0
    %838 = vdwg.mxu0
    %v839 = vsel %vm400, %v831, -inf
    %840 = vmax.xlane.f32.xlu0 %v839
    %v841 = vpop.xlane.xlu0 %840
    %v842 = vsel %vm400, %v836, -inf
    %843 = vmax.xlane.f32.xlu0 %v842
    %v844 = vpop.xlane.xlu0 %843
    %v845 = vsub.f32 %v831, %v841
    %v846 = vsub.f32 %v836, %v844
    %v847 = vmul.f32 %v845, 1.442695
    %v848 = vpow.pop %v847
    %v849 = vmul.f32 %v846, 1.442695
    %v850 = vpow.pop %v849
    %v851 = vsel %vm400, %v848, 0.0
    %852 = vadd.xlane.f32.xlu0 %v851
    %v853 = vpop.xlane.xlu0 %852
    %v854 = vsel %vm400, %v850, 0.0
    %855 = vadd.xlane.f32.xlu0 %v854
    %v856 = vpop.xlane.xlu0 %855
    %v857 = vrcp.pop %v853
    %v858 = vrcp.pop %v856
    %v859 = vmul.f32 %v848, %v857
    %v860 = vmul.f32 %v850, %v858
    %v862 = vsel %vm400, %v859, 0
    %v865 = vsel %vm400, %v860, 0
    %v868 = vsel %vm400, %v276, 0
    %870 = vmatprep.subr.mxu0 0.0
    %871 = vmatpush1.xpose.msra.mxu0 0.0
    %872 = vmatprep.subr.mxu0 0.0
    %873 = vmatpush1.xpose.msra.mxu0 0.0
    %874 = vmatprep.subr.mxu0 0.0
    %875 = vmatpush1.xpose.msra.mxu0 0.0
    %876 = vmatprep.subr.mxu0 0.0
    %877 = vmatpush1.xpose.msra.mxu0 0.0
    %878 = vmatprep.subr.mxu0 0.0
    %879 = vmatpush1.xpose.msra.mxu0 0.0
    %880 = vmatprep.subr.mxu0 0.0
    %881 = vmatpush1.xpose.msra.mxu0 0.0
    %882 = vmatprep.subr.mxu0 0.0
    %883 = vmatpush1.xpose.msra.mxu0 0.0
    %884 = vmatprep.subr.mxu0 0.0
    %885 = vmatpush1.xpose.msra.mxu0 0.0
    %886 = vmatprep.subr.mxu0 0.0
    %887 = vmatpush1.xpose.msra.mxu0 0.0
    %888 = vmatprep.subr.mxu0 0.0
    %889 = vmatpush1.xpose.msra.mxu0 0.0
    %890 = vmatprep.subr.mxu0 0.0
    %891 = vmatpush1.xpose.msra.mxu0 0.0
    %892 = vmatprep.subr.mxu0 0.0
    %893 = vmatpush1.xpose.msra.mxu0 0.0
    %894 = vmatprep.subr.mxu0 0.0
    %895 = vmatpush1.xpose.msra.mxu0 0.0
    %896 = vmatprep.subr.mxu0 0.0
    %897 = vmatpush1.xpose.msra.mxu0 0.0
    %898 = vmatprep.subr.mxu0 0.0
    %899 = vmatpush1.xpose.msra.mxu0 0.0
    %900 = vmatprep.subr.mxu0 0.0
    %901 = vmatpush1.xpose.msra.mxu0 %v868
    %902 = vmatprep.subr.mxu0 0.0
    %903 = vmatpush2.xpose.msra.mxu0 0.0
    %904 = vmatprep.subr.mxu0 0.0
    %905 = vmatpush2.xpose.msra.mxu0 0.0
    %906 = vmatprep.subr.mxu0 0.0
    %907 = vmatpush2.xpose.msra.mxu0 0.0
    %908 = vmatprep.subr.mxu0 0.0
    %909 = vmatpush2.xpose.msra.mxu0 0.0
    %910 = vmatprep.subr.mxu0 0.0
    %911 = vmatpush2.xpose.msra.mxu0 0.0
    %912 = vmatprep.subr.mxu0 0.0
    %913 = vmatpush2.xpose.msra.mxu0 0.0
    %914 = vmatprep.subr.mxu0 0.0
    %915 = vmatpush2.xpose.msra.mxu0 0.0
    %916 = vmatprep.subr.mxu0 0.0
    %917 = vmatpush2.xpose.msra.mxu0 0.0
    %918 = vmatprep.subr.mxu0 0.0
    %919 = vmatpush2.xpose.msra.mxu0 0.0
    %920 = vmatprep.subr.mxu0 0.0
    %921 = vmatpush2.xpose.msra.mxu0 0.0
    %922 = vmatprep.subr.mxu0 0.0
    %923 = vmatpush2.xpose.msra.mxu0 0.0
    %924 = vmatprep.subr.mxu0 0.0
    %925 = vmatpush2.xpose.msra.mxu0 0.0
    %926 = vmatprep.subr.mxu0 0.0
    %927 = vmatpush2.xpose.msra.mxu0 0.0
    %928 = vmatprep.subr.mxu0 0.0
    %929 = vmatpush2.xpose.msra.mxu0 0.0
    %930 = vmatprep.subr.mxu0 0.0
    %931 = vmatpush2.xpose.msra.mxu0 0.0
    %932 = vmatprep.subr.mxu0 0.0
    %933 = vmatpush2.xpose.msra.mxu0 0.0
    %934 = vmatprep.mubr.f32.mxu0 0.0
    %935 = vmatmul.mubr.f32.gmra.mxu0 %v862
    %v936 = vpop.f32.mrf.mxu0
    %v937 = vadd.f32 0.0, %v936
    %v938 = vpop.f32.mrf.mxu0
    %939 = vmatprep.mubr.f32.mxu0 0.0
    %940 = vmatmul.mubr.f32.gmra.mxu0 %v865
    %v941 = vpop.f32.mrf.mxu0
    %v942 = vadd.f32 0.0, %v941
    %v943 = vpop.f32.mrf.mxu0
    %944 = vdwg.mxu0
    %945 = vxpose.xlu0.b32.start [1/16] %v241, 128
    %946 = vxpose.xlu0.b32.cont [2/16] 0.0, 128
    %947 = vxpose.xlu0.b32.cont [3/16] 0.0, 128
    %948 = vxpose.xlu0.b32.cont [4/16] 0.0, 128
    %949 = vxpose.xlu0.b32.cont [5/16] 0.0, 128
    %950 = vxpose.xlu0.b32.cont [6/16] 0.0, 128
    %951 = vxpose.xlu0.b32.cont [7/16] 0.0, 128
    %952 = vxpose.xlu0.b32.cont [8/16] 0.0, 128
    %953 = vxpose.xlu0.b32.cont [9/16] 0.0, 128
    %954 = vxpose.xlu0.b32.cont [10/16] 0.0, 128
    %955 = vxpose.xlu0.b32.cont [11/16] 0.0, 128
    %956 = vxpose.xlu0.b32.cont [12/16] 0.0, 128
    %957 = vxpose.xlu0.b32.cont [13/16] 0.0, 128
    %958 = vxpose.xlu0.b32.cont [14/16] 0.0, 128
    %959 = vxpose.xlu0.b32.cont [15/16] 0.0, 128
    %960 = vxpose.xlu0.b32.end [16/16] 0.0, 128
    %v961 = vpop.trf.xlu0
    %v962 = vpop.trf.xlu0
    %v963 = vpop.trf.xlu0
    %v964 = vpop.trf.xlu0
    %v965 = vpop.trf.xlu0
    %v966 = vpop.trf.xlu0
    %v967 = vpop.trf.xlu0
    %v968 = vpop.trf.xlu0
    %v969 = vpop.trf.xlu0
    %v970 = vpop.trf.xlu0
    %v971 = vpop.trf.xlu0
    %v972 = vpop.trf.xlu0
    %v973 = vpop.trf.xlu0
    %v974 = vpop.trf.xlu0
    %v975 = vpop.trf.xlu0
    %v976 = vpop.trf.xlu0
    %v978 = vsel %vm318, %v961, 0
    %v981 = vsel %vm318, %v962, 0
    %983 = vmatprep.subr.mxu0 0.0
    %984 = vmatpush1.msra.mxu0 0.0
    %985 = vmatprep.subr.mxu0 0.0
    %986 = vmatpush1.msra.mxu0 0.0
    %987 = vmatprep.subr.mxu0 0.0
    %988 = vmatpush1.msra.mxu0 0.0
    %989 = vmatprep.subr.mxu0 0.0
    %990 = vmatpush1.msra.mxu0 0.0
    %991 = vmatprep.subr.mxu0 0.0
    %992 = vmatpush1.msra.mxu0 0.0
    %993 = vmatprep.subr.mxu0 0.0
    %994 = vmatpush1.msra.mxu0 0.0
    %995 = vmatprep.subr.mxu0 0.0
    %996 = vmatpush1.msra.mxu0 0.0
    %997 = vmatprep.subr.mxu0 0.0
    %998 = vmatpush1.msra.mxu0 0.0
    %999 = vmatprep.subr.mxu0 0.0
    %1000 = vmatpush1.msra.mxu0 0.0
    %1001 = vmatprep.subr.mxu0 0.0
    %1002 = vmatpush1.msra.mxu0 0.0
    %1003 = vmatprep.subr.mxu0 0.0
    %1004 = vmatpush1.msra.mxu0 0.0
    %1005 = vmatprep.subr.mxu0 0.0
    %1006 = vmatpush1.msra.mxu0 0.0
    %1007 = vmatprep.subr.mxu0 0.0
    %1008 = vmatpush1.msra.mxu0 0.0
    %1009 = vmatprep.subr.mxu0 0.0
    %1010 = vmatpush1.msra.mxu0 0.0
    %1011 = vmatprep.subr.mxu0 0.0
    %1012 = vmatpush1.msra.mxu0 0.0
    %1013 = vmatprep.subr.mxu0 0.0
    %1014 = vmatpush1.msra.mxu0 %v261
    %1015 = vmatprep.subr.mxu0 0.0
    %1016 = vmatpush2.msra.mxu0 0.0
    %1017 = vmatprep.subr.mxu0 0.0
    %1018 = vmatpush2.msra.mxu0 0.0
    %1019 = vmatprep.subr.mxu0 0.0
    %1020 = vmatpush2.msra.mxu0 0.0
    %1021 = vmatprep.subr.mxu0 0.0
    %1022 = vmatpush2.msra.mxu0 0.0
    %1023 = vmatprep.subr.mxu0 0.0
    %1024 = vmatpush2.msra.mxu0 0.0
    %1025 = vmatprep.subr.mxu0 0.0
    %1026 = vmatpush2.msra.mxu0 0.0
    %1027 = vmatprep.subr.mxu0 0.0
    %1028 = vmatpush2.msra.mxu0 0.0
    %1029 = vmatprep.subr.mxu0 0.0
    %1030 = vmatpush2.msra.mxu0 0.0
    %1031 = vmatprep.subr.mxu0 0.0
    %1032 = vmatpush2.msra.mxu0 0.0
    %1033 = vmatprep.subr.mxu0 0.0
    %1034 = vmatpush2.msra.mxu0 0.0
    %1035 = vmatprep.subr.mxu0 0.0
    %1036 = vmatpush2.msra.mxu0 0.0
    %1037 = vmatprep.subr.mxu0 0.0
    %1038 = vmatpush2.msra.mxu0 0.0
    %1039 = vmatprep.subr.mxu0 0.0
    %1040 = vmatpush2.msra.mxu0 0.0
    %1041 = vmatprep.subr.mxu0 0.0
    %1042 = vmatpush2.msra.mxu0 0.0
    %1043 = vmatprep.subr.mxu0 0.0
    %1044 = vmatpush2.msra.mxu0 0.0
    %1045 = vmatprep.subr.mxu0 0.0
    %1046 = vmatpush2.msra.mxu0 0.0
    %1047 = vmatprep.mubr.f32.mxu0 0.0
    %1048 = vmatmul.mubr.f32.gmra.mxu0 %v978
    %v1049 = vpop.f32.mrf.mxu0
    %v1050 = vadd.f32 %v284, %v1049
    %v1051 = vpop.f32.mrf.mxu0
    %1052 = vmatprep.mubr.f32.mxu0 0.0
    %1053 = vmatmul.mubr.f32.gmra.mxu0 %v981
    %v1054 = vpop.f32.mrf.mxu0
    %v1055 = vadd.f32 %v285, %v1054
    %v1056 = vpop.f32.mrf.mxu0
    %1057 = vdwg.mxu0
    %v1058 = vsel %vm400, %v1050, -inf
    %1059 = vmax.xlane.f32.xlu0 %v1058
    %v1060 = vpop.xlane.xlu0 %1059
    %v1061 = vsel %vm400, %v1055, -inf
    %1062 = vmax.xlane.f32.xlu0 %v1061
    %v1063 = vpop.xlane.xlu0 %1062
    %v1064 = vsub.f32 %v1050, %v1060
    %v1065 = vsub.f32 %v1055, %v1063
    %v1066 = vmul.f32 %v1064, 1.442695
    %v1067 = vpow.pop %v1066
    %v1068 = vmul.f32 %v1065, 1.442695
    %v1069 = vpow.pop %v1068
    %v1070 = vsel %vm400, %v1067, 0.0
    %1071 = vadd.xlane.f32.xlu0 %v1070
    %v1072 = vpop.xlane.xlu0 %1071
    %v1073 = vsel %vm400, %v1069, 0.0
    %1074 = vadd.xlane.f32.xlu0 %v1073
    %v1075 = vpop.xlane.xlu0 %1074
    %v1076 = vrcp.pop %v1072
    %v1077 = vrcp.pop %v1075
    %v1078 = vmul.f32 %v1067, %v1076
    %v1079 = vmul.f32 %v1069, %v1077
    %v1081 = vsel %vm400, %v1078, 0
    %v1084 = vsel %vm400, %v1079, 0
    %v1087 = vsel %vm400, %v281, 0
    %1089 = vmatprep.subr.mxu0 0.0
    %1090 = vmatpush1.xpose.msra.mxu0 0.0
    %1091 = vmatprep.subr.mxu0 0.0
    %1092 = vmatpush1.xpose.msra.mxu0 0.0
    %1093 = vmatprep.subr.mxu0 0.0
    %1094 = vmatpush1.xpose.msra.mxu0 0.0
    %1095 = vmatprep.subr.mxu0 0.0
    %1096 = vmatpush1.xpose.msra.mxu0 0.0
    %1097 = vmatprep.subr.mxu0 0.0
    %1098 = vmatpush1.xpose.msra.mxu0 0.0
    %1099 = vmatprep.subr.mxu0 0.0
    %1100 = vmatpush1.xpose.msra.mxu0 0.0
    %1101 = vmatprep.subr.mxu0 0.0
    %1102 = vmatpush1.xpose.msra.mxu0 0.0
    %1103 = vmatprep.subr.mxu0 0.0
    %1104 = vmatpush1.xpose.msra.mxu0 0.0
    %1105 = vmatprep.subr.mxu0 0.0
    %1106 = vmatpush1.xpose.msra.mxu0 0.0
    %1107 = vmatprep.subr.mxu0 0.0
    %1108 = vmatpush1.xpose.msra.mxu0 0.0
    %1109 = vmatprep.subr.mxu0 0.0
    %1110 = vmatpush1.xpose.msra.mxu0 0.0
    %1111 = vmatprep.subr.mxu0 0.0
    %1112 = vmatpush1.xpose.msra.mxu0 0.0
    %1113 = vmatprep.subr.mxu0 0.0
    %1114 = vmatpush1.xpose.msra.mxu0 0.0
    %1115 = vmatprep.subr.mxu0 0.0
    %1116 = vmatpush1.xpose.msra.mxu0 0.0
    %1117 = vmatprep.subr.mxu0 0.0
    %1118 = vmatpush1.xpose.msra.mxu0 0.0
    %1119 = vmatprep.subr.mxu0 0.0
    %1120 = vmatpush1.xpose.msra.mxu0 %v1087
    %1121 = vmatprep.subr.mxu0 0.0
    %1122 = vmatpush2.xpose.msra.mxu0 0.0
    %1123 = vmatprep.subr.mxu0 0.0
    %1124 = vmatpush2.xpose.msra.mxu0 0.0
    %1125 = vmatprep.subr.mxu0 0.0
    %1126 = vmatpush2.xpose.msra.mxu0 0.0
    %1127 = vmatprep.subr.mxu0 0.0
    %1128 = vmatpush2.xpose.msra.mxu0 0.0
    %1129 = vmatprep.subr.mxu0 0.0
    %1130 = vmatpush2.xpose.msra.mxu0 0.0
    %1131 = vmatprep.subr.mxu0 0.0
    %1132 = vmatpush2.xpose.msra.mxu0 0.0
    %1133 = vmatprep.subr.mxu0 0.0
    %1134 = vmatpush2.xpose.msra.mxu0 0.0
    %1135 = vmatprep.subr.mxu0 0.0
    %1136 = vmatpush2.xpose.msra.mxu0 0.0
    %1137 = vmatprep.subr.mxu0 0.0
    %1138 = vmatpush2.xpose.msra.mxu0 0.0
    %1139 = vmatprep.subr.mxu0 0.0
    %1140 = vmatpush2.xpose.msra.mxu0 0.0
    %1141 = vmatprep.subr.mxu0 0.0
    %1142 = vmatpush2.xpose.msra.mxu0 0.0
    %1143 = vmatprep.subr.mxu0 0.0
    %1144 = vmatpush2.xpose.msra.mxu0 0.0
    %1145 = vmatprep.subr.mxu0 0.0
    %1146 = vmatpush2.xpose.msra.mxu0 0.0
    %1147 = vmatprep.subr.mxu0 0.0
    %1148 = vmatpush2.xpose.msra.mxu0 0.0
    %1149 = vmatprep.subr.mxu0 0.0
    %1150 = vmatpush2.xpose.msra.mxu0 0.0
    %1151 = vmatprep.subr.mxu0 0.0
    %1152 = vmatpush2.xpose.msra.mxu0 0.0
    %1153 = vmatprep.mubr.f32.mxu0 0.0
    %1154 = vmatmul.mubr.f32.gmra.mxu0 %v1081
    %v1155 = vpop.f32.mrf.mxu0
    %v1156 = vadd.f32 0.0, %v1155
    %v1157 = vpop.f32.mrf.mxu0
    %1158 = vmatprep.mubr.f32.mxu0 0.0
    %1159 = vmatmul.mubr.f32.gmra.mxu0 %v1084
    %v1160 = vpop.f32.mrf.mxu0
    %v1161 = vadd.f32 0.0, %v1160
    %v1162 = vpop.f32.mrf.mxu0
    %1163 = vdwg.mxu0
    %1166 = vrot.lane.b32.xlu0 %v718, 8
    %v1167 = vpop.permute.xlu0 %1166
    %1168 = vrot.lane.b32.xlu0 %v723, 8
    %v1169 = vpop.permute.xlu0 %1168
    %1174 = vrot.lane.b32.xlu0 %v937, 16
    %v1175 = vpop.permute.xlu0 %1174
    %1176 = vrot.lane.b32.xlu0 %v942, 16
    %v1177 = vpop.permute.xlu0 %1176
    %1182 = vrot.lane.b32.xlu0 %v1156, 24
    %v1183 = vpop.permute.xlu0 %1182
    %1184 = vrot.lane.b32.xlu0 %v1161, 24
    %v1185 = vpop.permute.xlu0 %1184
    %v1188 = vsel %vm318, %v499, %v1167
    %v1189 = vsel %vm318, %v504, %v1169
    %v1190 = vsel %vm400, %v1188, %v1175
    %v1191 = vsel %vm400, %v1189, %v1177
    %vm1192 = vcmask 195584
    %v1193 = vsel %vm1192, %v1190, %v1183
    %v1194 = vsel %vm1192, %v1191, %v1185
    %v1195 = vld [vmem:[%s3] sm:$0xff]
    %v1196 = vld [vmem:[%s3 + $0x8] sm:$0xff]
    %v1197 = vld [vmem:[%s3 + $0x10] sm:$0xff]
    %v1198 = vld [vmem:[%s3 + $0x18] sm:$0xff]
    %v1199 = vld [vmem:[%s6 + $0x1] sm:$0x1]
    %v1200 = vlaneseq
    %v1201 = vshrl.u32 %v1200, 7
    %v1202 = vsub.s32 0, %v1201
    %v1203 = vrot.slane %v1199, %v1202
    %v1205 = vsel %vm116, %v1193, 0
    %v1208 = vsel %vm116, %v1194, 0
    %1210 = vmatprep.subr.mxu0 0.0
    %1211 = vmatpush1.msra.mxu0 0.0
    %1212 = vmatprep.subr.mxu0 0.0
    %1213 = vmatpush1.msra.mxu0 0.0
    %1214 = vmatprep.subr.mxu0 0.0
    %1215 = vmatpush1.msra.mxu0 0.0
    %1216 = vmatprep.subr.mxu0 0.0
    %1217 = vmatpush1.msra.mxu0 0.0
    %1218 = vmatprep.subr.mxu0 0.0
    %1219 = vmatpush1.msra.mxu0 0.0
    %1220 = vmatprep.subr.mxu0 0.0
    %1221 = vmatpush1.msra.mxu0 0.0
    %1222 = vmatprep.subr.mxu0 0.0
    %1223 = vmatpush1.msra.mxu0 0.0
    %1224 = vmatprep.subr.mxu0 0.0
    %1225 = vmatpush1.msra.mxu0 0.0
    %1226 = vmatprep.subr.mxu0 0.0
    %1227 = vmatpush1.msra.mxu0 0.0
    %1228 = vmatprep.subr.mxu0 0.0
    %1229 = vmatpush1.msra.mxu0 0.0
    %1230 = vmatprep.subr.mxu0 0.0
    %1231 = vmatpush1.msra.mxu0 0.0
    %1232 = vmatprep.subr.mxu0 0.0
    %1233 = vmatpush1.msra.mxu0 0.0
    %1234 = vmatprep.subr.mxu0 0.0
    %1235 = vmatpush1.msra.mxu0 %v1198
    %1236 = vmatprep.subr.mxu0 0.0
    %1237 = vmatpush1.msra.mxu0 %v1197
    %1238 = vmatprep.subr.mxu0 0.0
    %1239 = vmatpush1.msra.mxu0 %v1196
    %1240 = vmatprep.subr.mxu0 0.0
    %1241 = vmatpush1.msra.mxu0 %v1195
    %1242 = vmatprep.subr.mxu0 0.0
    %1243 = vmatpush2.msra.mxu0 0.0
    %1244 = vmatprep.subr.mxu0 0.0
    %1245 = vmatpush2.msra.mxu0 0.0
    %1246 = vmatprep.subr.mxu0 0.0
    %1247 = vmatpush2.msra.mxu0 0.0
    %1248 = vmatprep.subr.mxu0 0.0
    %1249 = vmatpush2.msra.mxu0 0.0
    %1250 = vmatprep.subr.mxu0 0.0
    %1251 = vmatpush2.msra.mxu0 0.0
    %1252 = vmatprep.subr.mxu0 0.0
    %1253 = vmatpush2.msra.mxu0 0.0
    %1254 = vmatprep.subr.mxu0 0.0
    %1255 = vmatpush2.msra.mxu0 0.0
    %1256 = vmatprep.subr.mxu0 0.0
    %1257 = vmatpush2.msra.mxu0 0.0
    %1258 = vmatprep.subr.mxu0 0.0
    %1259 = vmatpush2.msra.mxu0 0.0
    %1260 = vmatprep.subr.mxu0 0.0
    %1261 = vmatpush2.msra.mxu0 0.0
    %1262 = vmatprep.subr.mxu0 0.0
    %1263 = vmatpush2.msra.mxu0 0.0
    %1264 = vmatprep.subr.mxu0 0.0
    %1265 = vmatpush2.msra.mxu0 0.0
    %1266 = vmatprep.subr.mxu0 0.0
    %1267 = vmatpush2.msra.mxu0 0.0
    %1268 = vmatprep.subr.mxu0 0.0
    %1269 = vmatpush2.msra.mxu0 0.0
    %1270 = vmatprep.subr.mxu0 0.0
    %1271 = vmatpush2.msra.mxu0 0.0
    %1272 = vmatprep.subr.mxu0 0.0
    %1273 = vmatpush2.msra.mxu0 0.0
    %1274 = vmatprep.mubr.f32.mxu0 0.0
    %1275 = vmatmul.mubr.f32.gmra.mxu0 %v1205
    %v1276 = vpop.f32.mrf.mxu0
    %v1277 = vadd.f32 %v1203, %v1276
    %v1278 = vpop.f32.mrf.mxu0
    %1279 = vmatprep.mubr.f32.mxu0 0.0
    %1280 = vmatmul.mubr.f32.gmra.mxu0 %v1208
    %v1281 = vpop.f32.mrf.mxu0
    %v1282 = vadd.f32 %v1203, %v1281
    %v1283 = vpop.f32.mrf.mxu0
    %1284 = vdwg.mxu0
    %v1285 = vadd.f32 %v30, %v1277
    %v1286 = vadd.f32 %v31, %v1282
    %v1287 = vsel %vm116, %v1285, 0.0
    %1288 = vadd.xlane.f32.xlu0 %v1287
    %v1289 = vpop.xlane.xlu0 %1288
    %v1290 = vsel %vm116, %v1286, 0.0
    %1291 = vadd.xlane.f32.xlu0 %v1290
    %v1292 = vpop.xlane.xlu0 %1291
    %v1293 = vrcp.pop 32.0
    %v1294 = vmul.f32 %v1289, %v1293
    %v1295 = vmul.f32 %v1292, %v1293
    %v1296 = vsub.f32 %v1285, %v1294
    %v1297 = vsub.f32 %v1286, %v1295
    %v1298 = vmul.f32 %v1296, %v1296
    %v1299 = vmul.f32 %v1297, %v1297
    %v1300 = vsel %vm116, %v1298, 0.0
    %1301 = vadd.xlane.f32.xlu0 %v1300
    %v1302 = vpop.xlane.xlu0 %1301
    %v1303 = vsel %vm116, %v1299, 0.0
    %1304 = vadd.xlane.f32.xlu0 %v1303
    %v1305 = vpop.xlane.xlu0 %1304
    %v1306 = vmul.f32 %v1302, %v1293
    %v1307 = vmul.f32 %v1305, %v1293
    %v1308 = vadd.f32 %v1306, 1e-05
    %v1309 = vadd.f32 %v1307, 1e-05
    %v1310 = vrsqrt.pop %v1308
    %v1311 = vrsqrt.pop %v1309
    %v1312 = vmul.f32 %v1296, %v1310
    %v1313 = vmul.f32 %v1297, %v1311
    %v1314 = vld [vmem:[%s6 + $0x2] sm:$0x1]
    %v1315 = vlaneseq
    %v1316 = vshrl.u32 %v1315, 7
    %v1317 = vsub.s32 0, %v1316
    %v1318 = vrot.slane %v1314, %v1317
    %v1319 = vmul.f32 %v1312, %v1318
    %v1320 = vmul.f32 %v1313, %v1318
    %v1321 = vld [vmem:[%s6 + $0x3] sm:$0x1]
    %v1322 = vlaneseq
    %v1323 = vshrl.u32 %v1322, 7
    %v1324 = vsub.s32 0, %v1323
    %v1325 = vrot.slane %v1321, %v1324
    %v1326 = vadd.f32 %v1319, %v1325
    %v1327 = vadd.f32 %v1320, %v1325
    %v1328 = vld [vmem:[%s4] sm:$0xff]
    %v1329 = vld [vmem:[%s4 + $0x8] sm:$0xff]
    %v1330 = vld [vmem:[%s4 + $0x10] sm:$0xff]
    %v1331 = vld [vmem:[%s4 + $0x18] sm:$0xff]
    %v1332 = vld [vmem:[%s6] sm:$0x1]
    %v1333 = vlaneseq
    %v1334 = vshrl.u32 %v1333, 7
    %v1335 = vsub.s32 0, %v1334
    %v1336 = vrot.slane %v1332, %v1335
    %v1338 = vsel %vm116, %v1326, 0
    %v1341 = vsel %vm116, %v1327, 0
    %1343 = vmatprep.subr.mxu0 0.0
    %1344 = vmatpush1.msra.mxu0 0.0
    %1345 = vmatprep.subr.mxu0 0.0
    %1346 = vmatpush1.msra.mxu0 0.0
    %1347 = vmatprep.subr.mxu0 0.0
    %1348 = vmatpush1.msra.mxu0 0.0
    %1349 = vmatprep.subr.mxu0 0.0
    %1350 = vmatpush1.msra.mxu0 0.0
    %1351 = vmatprep.subr.mxu0 0.0
    %1352 = vmatpush1.msra.mxu0 0.0
    %1353 = vmatprep.subr.mxu0 0.0
    %1354 = vmatpush1.msra.mxu0 0.0
    %1355 = vmatprep.subr.mxu0 0.0
    %1356 = vmatpush1.msra.mxu0 0.0
    %1357 = vmatprep.subr.mxu0 0.0
    %1358 = vmatpush1.msra.mxu0 0.0
    %1359 = vmatprep.subr.mxu0 0.0
    %1360 = vmatpush1.msra.mxu0 0.0
    %1361 = vmatprep.subr.mxu0 0.0
    %1362 = vmatpush1.msra.mxu0 0.0
    %1363 = vmatprep.subr.mxu0 0.0
    %1364 = vmatpush1.msra.mxu0 0.0
    %1365 = vmatprep.subr.mxu0 0.0
    %1366 = vmatpush1.msra.mxu0 0.0
    %1367 = vmatprep.subr.mxu0 0.0
    %1368 = vmatpush1.msra.mxu0 %v1331
    %1369 = vmatprep.subr.mxu0 0.0
    %1370 = vmatpush1.msra.mxu0 %v1330
    %1371 = vmatprep.subr.mxu0 0.0
    %1372 = vmatpush1.msra.mxu0 %v1329
    %1373 = vmatprep.subr.mxu0 0.0
    %1374 = vmatpush1.msra.mxu0 %v1328
    %1375 = vmatprep.subr.mxu0 0.0
    %1376 = vmatpush2.msra.mxu0 0.0
    %1377 = vmatprep.subr.mxu0 0.0
    %1378 = vmatpush2.msra.mxu0 0.0
    %1379 = vmatprep.subr.mxu0 0.0
    %1380 = vmatpush2.msra.mxu0 0.0
    %1381 = vmatprep.subr.mxu0 0.0
    %1382 = vmatpush2.msra.mxu0 0.0
    %1383 = vmatprep.subr.mxu0 0.0
    %1384 = vmatpush2.msra.mxu0 0.0
    %1385 = vmatprep.subr.mxu0 0.0
    %1386 = vmatpush2.msra.mxu0 0.0
    %1387 = vmatprep.subr.mxu0 0.0
    %1388 = vmatpush2.msra.mxu0 0.0
    %1389 = vmatprep.subr.mxu0 0.0
    %1390 = vmatpush2.msra.mxu0 0.0
    %1391 = vmatprep.subr.mxu0 0.0
    %1392 = vmatpush2.msra.mxu0 0.0
    %1393 = vmatprep.subr.mxu0 0.0
    %1394 = vmatpush2.msra.mxu0 0.0
    %1395 = vmatprep.subr.mxu0 0.0
    %1396 = vmatpush2.msra.mxu0 0.0
    %1397 = vmatprep.subr.mxu0 0.0
    %1398 = vmatpush2.msra.mxu0 0.0
    %1399 = vmatprep.subr.mxu0 0.0
    %1400 = vmatpush2.msra.mxu0 0.0
    %1401 = vmatprep.subr.mxu0 0.0
    %1402 = vmatpush2.msra.mxu0 0.0
    %1403 = vmatprep.subr.mxu0 0.0
    %1404 = vmatpush2.msra.mxu0 0.0
    %1405 = vmatprep.subr.mxu0 0.0
    %1406 = vmatpush2.msra.mxu0 0.0
    %1407 = vmatprep.mubr.f32.mxu0 0.0
    %1408 = vmatmul.mubr.f32.gmra.mxu0 %v1338
    %v1409 = vpop.f32.mrf.mxu0
    %v1410 = vadd.f32 %v1336, %v1409
    %v1411 = vpop.f32.mrf.mxu0
    %1412 = vmatprep.mubr.f32.mxu0 0.0
    %1413 = vmatmul.mubr.f32.gmra.mxu0 %v1341
    %v1414 = vpop.f32.mrf.mxu0
    %v1415 = vadd.f32 %v1336, %v1414
    %v1416 = vpop.f32.mrf.mxu0
    %1417 = vdwg.mxu0
    %v1418 = vmax.f32 %v1410, 0.0
    %v1419 = vmax.f32 %v1415, 0.0
    %v1420 = vld [vmem:[%s5] sm:$0xff]
    %v1421 = vld [vmem:[%s5 + $0x8] sm:$0xff]
    %v1422 = vld [vmem:[%s5 + $0x10] sm:$0xff]
    %v1423 = vld [vmem:[%s5 + $0x18] sm:$0xff]
    %v1424 = vld [vmem:[%s5 + $0x20] sm:$0xff]
    %v1425 = vld [vmem:[%s5 + $0x28] sm:$0xff]
    %v1426 = vld [vmem:[%s5 + $0x30] sm:$0xff]
    %v1427 = vld [vmem:[%s5 + $0x38] sm:$0xff]
    %v1428 = vld [vmem:[%s6 + $0x4] sm:$0x1]
    %v1429 = vlaneseq
    %v1430 = vshrl.u32 %v1429, 7
    %v1431 = vsub.s32 0, %v1430
    %v1432 = vrot.slane %v1428, %v1431
    %vm1433 = vcmask 523264
    %v1435 = vsel %vm1433, %v1418, 0
    %v1438 = vsel %vm1433, %v1419, 0
    %1440 = vmatprep.subr.mxu0 0.0
    %1441 = vmatpush1.msra.mxu0 0.0
    %1442 = vmatprep.subr.mxu0 0.0
    %1443 = vmatpush1.msra.mxu0 0.0
    %1444 = vmatprep.subr.mxu0 0.0
    %1445 = vmatpush1.msra.mxu0 0.0
    %1446 = vmatprep.subr.mxu0 0.0
    %1447 = vmatpush1.msra.mxu0 0.0
    %1448 = vmatprep.subr.mxu0 0.0
    %1449 = vmatpush1.msra.mxu0 0.0
    %1450 = vmatprep.subr.mxu0 0.0
    %1451 = vmatpush1.msra.mxu0 0.0
    %1452 = vmatprep.subr.mxu0 0.0
    %1453 = vmatpush1.msra.mxu0 0.0
    %1454 = vmatprep.subr.mxu0 0.0
    %1455 = vmatpush1.msra.mxu0 0.0
    %1456 = vmatprep.subr.mxu0 0.0
    %1457 = vmatpush1.msra.mxu0 %v1427
    %1458 = vmatprep.subr.mxu0 0.0
    %1459 = vmatpush1.msra.mxu0 %v1426
    %1460 = vmatprep.subr.mxu0 0.0
    %1461 = vmatpush1.msra.mxu0 %v1425
    %1462 = vmatprep.subr.mxu0 0.0
    %1463 = vmatpush1.msra.mxu0 %v1424
    %1464 = vmatprep.subr.mxu0 0.0
    %1465 = vmatpush1.msra.mxu0 %v1423
    %1466 = vmatprep.subr.mxu0 0.0
    %1467 = vmatpush1.msra.mxu0 %v1422
    %1468 = vmatprep.subr.mxu0 0.0
    %1469 = vmatpush1.msra.mxu0 %v1421
    %1470 = vmatprep.subr.mxu0 0.0
    %1471 = vmatpush1.msra.mxu0 %v1420
    %1472 = vmatprep.subr.mxu0 0.0
    %1473 = vmatpush2.msra.mxu0 0.0
    %1474 = vmatprep.subr.mxu0 0.0
    %1475 = vmatpush2.msra.mxu0 0.0
    %1476 = vmatprep.subr.mxu0 0.0
    %1477 = vmatpush2.msra.mxu0 0.0
    %1478 = vmatprep.subr.mxu0 0.0
    %1479 = vmatpush2.msra.mxu0 0.0
    %1480 = vmatprep.subr.mxu0 0.0
    %1481 = vmatpush2.msra.mxu0 0.0
    %1482 = vmatprep.subr.mxu0 0.0
    %1483 = vmatpush2.msra.mxu0 0.0
    %1484 = vmatprep.subr.mxu0 0.0
    %1485 = vmatpush2.msra.mxu0 0.0
    %1486 = vmatprep.subr.mxu0 0.0
    %1487 = vmatpush2.msra.mxu0 0.0
    %1488 = vmatprep.subr.mxu0 0.0
    %1489 = vmatpush2.msra.mxu0 0.0
    %1490 = vmatprep.subr.mxu0 0.0
    %1491 = vmatpush2.msra.mxu0 0.0
    %1492 = vmatprep.subr.mxu0 0.0
    %1493 = vmatpush2.msra.mxu0 0.0
    %1494 = vmatprep.subr.mxu0 0.0
    %1495 = vmatpush2.msra.mxu0 0.0
    %1496 = vmatprep.subr.mxu0 0.0
    %1497 = vmatpush2.msra.mxu0 0.0
    %1498 = vmatprep.subr.mxu0 0.0
    %1499 = vmatpush2.msra.mxu0 0.0
    %1500 = vmatprep.subr.mxu0 0.0
    %1501 = vmatpush2.msra.mxu0 0.0
    %1502 = vmatprep.subr.mxu0 0.0
    %1503 = vmatpush2.msra.mxu0 0.0
    %1504 = vmatprep.mubr.f32.mxu0 0.0
    %1505 = vmatmul.mubr.f32.gmra.mxu0 %v1435
    %v1506 = vpop.f32.mrf.mxu0
    %v1507 = vadd.f32 %v1432, %v1506
    %v1508 = vpop.f32.mrf.mxu0
    %1509 = vmatprep.mubr.f32.mxu0 0.0
    %1510 = vmatmul.mubr.f32.gmra.mxu0 %v1438
    %v1511 = vpop.f32.mrf.mxu0
    %v1512 = vadd.f32 %v1432, %v1511
    %v1513 = vpop.f32.mrf.mxu0
    %1514 = vdwg.mxu0
    %v1515 = vadd.f32 %v1326, %v1507
    %v1516 = vadd.f32 %v1327, %v1512
    %v1517 = vsel %vm116, %v1515, 0.0
    %1518 = vadd.xlane.f32.xlu0 %v1517
    %v1519 = vpop.xlane.xlu0 %1518
    %v1520 = vsel %vm116, %v1516, 0.0
    %1521 = vadd.xlane.f32.xlu0 %v1520
    %v1522 = vpop.xlane.xlu0 %1521
    %v1523 = vmul.f32 %v1519, %v1293
    %v1524 = vmul.f32 %v1522, %v1293
    %v1525 = vsub.f32 %v1515, %v1523
    %v1526 = vsub.f32 %v1516, %v1524
    %v1527 = vmul.f32 %v1525, %v1525
    %v1528 = vmul.f32 %v1526, %v1526
    %v1529 = vsel %vm116, %v1527, 0.0
    %1530 = vadd.xlane.f32.xlu0 %v1529
    %v1531 = vpop.xlane.xlu0 %1530
    %v1532 = vsel %vm116, %v1528, 0.0
    %1533 = vadd.xlane.f32.xlu0 %v1532
    %v1534 = vpop.xlane.xlu0 %1533
    %v1535 = vmul.f32 %v1531, %v1293
    %v1536 = vmul.f32 %v1534, %v1293
    %v1537 = vadd.f32 %v1535, 1e-05
    %v1538 = vadd.f32 %v1536, 1e-05
    %v1539 = vrsqrt.pop %v1537
    %v1540 = vrsqrt.pop %v1538
    %v1541 = vmul.f32 %v1525, %v1539
    %v1542 = vmul.f32 %v1526, %v1540
    %v1543 = vld [vmem:[%s6 + $0x5] sm:$0x1]
    %v1544 = vlaneseq
    %v1545 = vshrl.u32 %v1544, 7
    %v1546 = vsub.s32 0, %v1545
    %v1547 = vrot.slane %v1543, %v1546
    %v1548 = vmul.f32 %v1541, %v1547
    %v1549 = vmul.f32 %v1542, %v1547
    %v1550 = vld [vmem:[%s6 + $0x6] sm:$0x1]
    %v1551 = vlaneseq
    %v1552 = vshrl.u32 %v1551, 7
    %v1553 = vsub.s32 0, %v1552
    %v1554 = vrot.slane %v1550, %v1553
    %v1555 = vadd.f32 %v1548, %v1554
    %v1556 = vadd.f32 %v1549, %v1554
    %1557 = vst.msk [vmem:[#allocation2] sm:$0xff] %vm116, %v1555
    %1558 = vst.msk [vmem:[#allocation2 + $0x8] sm:$0xff] %vm116, %v1556
    // Predicated region
    $region34: #{base_transformer_layer.1} parent=1 // pred_check
      _
    $region35: #{base_transformer_layer.1} parent=1 // pred_check_branch
      %1560 = sbr.rel (0) target = $region37
    $region36: #{base_transformer_layer.1} parent=1 // pred_region
      %s1562 = ssub.s32 256, 256
      %1563 = vsyncadd [#allocation3], %s1562
      %s1564 = sshll.u32 [#allocation2], 4
      %s1565 = int_to_ptr.vmem [resolvable:$true] %s1564
      %1570 = dma.vmem_to_hbm [thread:$0]  %s1565, 256, %s8, [#allocation3], 128, 128, 8
    $region37: #{base_transformer_layer.1} parent=1 // pred_fallthru
      _
    // Predicated region
    $region38: #{base_transformer_layer.1} parent=1 // pred_check
      _
    $region39: #{base_transformer_layer.1} parent=1 // pred_check_branch
      %1572 = sbr.rel (0) target = $region41
    $region40: #{base_transformer_layer.1} parent=1 // pred_region
      %1573 = dma.done [#allocation3], 256
    $region41: #{base_transformer_layer.1} parent=1 // pred_fallthru
      _
    %1574 = vsyncpa [#allocation3], 1

</llo_original>
